<compile_context>
chip_gen: v6e
topology: v6e:2x2x1
jax: 0.10.0
libtpu: 0.0.40
codegen_flags: <defaults>
</compile_context>

<pallas_src>
import jax
import jax.numpy as jnp
import numpy as np
from jax.experimental import pallas as pl
from jax.experimental.pallas import tpu as pltpu


def _make_rnn2fc_kernel(T, Btile):
    """Kernel closed over static time length T and batch-tile size Btile."""

    def kernel(x_ref, h0_ref, wih_ref, whh_ref, brnn_ref,
               w1_ref, b1_ref, w2_ref, b2_ref,
               p_ref, hN_ref, xproj_ref):
        # 1) Hoisted batched input projection for all T steps of this batch
        #    tile: one MXU matmul (bf16 inputs, f32 accumulate), bias folded
        #    in, result parked in VMEM scratch (bounds vreg pressure).
        xproj_ref[...] = (
            jnp.dot(x_ref[...].astype(jnp.bfloat16),
                    wih_ref[...].astype(jnp.bfloat16),
                    preferred_element_type=jnp.float32)
            + brnn_ref[...])                                    # (T*Btile, H)

        whh = whh_ref[...].astype(jnp.bfloat16)                 # (H, H), hoisted cast
        w1 = w1_ref[...]                                        # (H, F)
        b1 = b1_ref[...]                                        # (1, F)
        w2 = w2_ref[...]                                        # (F, 128) zero-padded
        b2 = b2_ref[...]                                        # (1, 128) zero-padded

        # 2) Recurrence, fully unrolled at trace time (T is static).  The only
        #    serial dependence is MXU -> add -> tanh; the FC head for step t is
        #    independent filler hidden under the next step's slack.
        h = h0_ref[...]                                         # (Btile, H) f32
        for t in range(T):
            pre = xproj_ref[pl.ds(t * Btile, Btile), :] + jnp.dot(
                h.astype(jnp.bfloat16), whh,
                preferred_element_type=jnp.float32)
            h = jnp.tanh(pre)

            # 3) Interleaved FC head for step t; lane-dense (128-wide) store.
            hid = jnp.maximum(
                jnp.dot(h, w1, preferred_element_type=jnp.float32) + b1, 0.0)
            p_ref[pl.ds(t * Btile, Btile), :] = (
                jnp.dot(hid, w2, preferred_element_type=jnp.float32) + b2
            ).astype(p_ref.dtype)

        hN_ref[...] = h.astype(hN_ref.dtype)

    return kernel


def rnn2fc_forward(x, h, params):
    """x: (B, T, n_inputs) f32, h: (1, B, n_rnn_hidden) f32.

    Returns (p, h_out) with p: (B, T, n_outputs), h_out: (1, B, n_rnn_hidden),
    matching torch nn.RNN(batch_first=True) + Sequential(Linear, ReLU, Linear).
    """
    B, T, I = x.shape
    H = params["w_hh"].shape[0]
    F = params["w1"].shape[0]
    O = params["w2"].shape[0]
    Opad = max(128, ((O + 127) // 128) * 128)       # lane-dense output width

    # Batch padding / tiling: sublane-aligned tiles; tiles become a "parallel"
    # grid axis (uses both TensorCores on v7x for realistic B).
    Bp = max(8, ((B + 7) // 8) * 8)
    Btile = min(Bp, 128)
    Bp = ((Bp + Btile - 1) // Btile) * Btile
    nB = Bp // Btile

    # Layout glue in plain XLA (free relative to the kernel):
    x_tbi = jnp.transpose(x, (1, 0, 2))                           # (T, B, I)
    x_tbi = jnp.pad(x_tbi, ((0, 0), (0, Bp - B), (0, 0)))         # (T, Bp, I)
    # (T, Bp, I) -> (nB, T*Btile, I): per-tile rows are time-major.
    x_tiles = (x_tbi.reshape(T, nB, Btile, I)
               .transpose(1, 0, 2, 3)
               .reshape(nB, T * Btile, I))
    h0 = jnp.pad(h[0], ((0, Bp - B), (0, 0)))                     # (Bp, H)
    wih_t = params["w_ih"].T                                      # (I, H)
    whh_t = params["w_hh"].T                                      # (H, H)
    brnn = (params["b_ih"] + params["b_hh"]).reshape(1, H)        # (1, H)
    w1_t = params["w1"].T                                         # (H, F)
    b1 = params["b1"].reshape(1, F)                               # (1, F)
    w2p = jnp.pad(params["w2"].T, ((0, 0), (0, Opad - O)))        # (F, Opad)
    b2p = jnp.pad(params["b2"].reshape(1, O), ((0, 0), (0, Opad - O)))

    def fixed(shape):  # whole-array operand, identical block every grid step
        return pl.BlockSpec(shape, lambda b, _s=shape: tuple(0 for _ in _s))

    flops = 2 * T * Bp * (I * H + H * H + H * F + F * Opad)
    bytes_accessed = 4 * (T * Bp * I + 2 * Bp * H + I * H + H * H + H
                          + H * F + F + F * Opad + Opad + T * Bp * Opad)

    p_tiles, h_last = pl.pallas_call(
        _make_rnn2fc_kernel(T, Btile),
        out_shape=(
            jax.ShapeDtypeStruct((nB, T * Btile, Opad), jnp.float32),
            jax.ShapeDtypeStruct((Bp, H), jnp.float32),
        ),
        grid=(nB,),
        in_specs=[
            pl.BlockSpec((None, T * Btile, I), lambda b: (b, 0, 0)),   # x tile
            pl.BlockSpec((Btile, H), lambda b: (b, 0)),                # h0 tile
            fixed((I, H)),                                             # Wih^T
            fixed((H, H)),                                             # Whh^T
            fixed((1, H)),                                             # b_ih + b_hh
            fixed((H, F)),                                             # W1^T
            fixed((1, F)),                                             # b1
            fixed((F, Opad)),                                          # W2^T (padded)
            fixed((1, Opad)),                                          # b2  (padded)
        ],
        out_specs=[
            pl.BlockSpec((None, T * Btile, Opad), lambda b: (b, 0, 0)),  # p slab
            pl.BlockSpec((Btile, H), lambda b: (b, 0)),                  # final h
        ],
        scratch_shapes=[pltpu.VMEM((T * Btile, H), jnp.float32)],        # x_proj
        compiler_params=pltpu.CompilerParams(
            dimension_semantics=("parallel",),
            vmem_limit_bytes=32 * 1024 * 1024),
        cost_estimate=pl.CostEstimate(
            flops=flops, transcendentals=T * Bp * H,
            bytes_accessed=bytes_accessed),
    )(x_tiles, h0, wih_t, whh_t, brnn, w1_t, b1, w2p, b2p)

    # Undo tiling / padding and slice the lane-dense output back to O.
    p_full = (p_tiles.reshape(nB, T, Btile, Opad)
              .transpose(1, 0, 2, 3)
              .reshape(T, Bp, Opad))
    p = jnp.transpose(p_full[:, :B, :O], (1, 0, 2))               # (B, T, O)
    h_out = h_last[:B][None, :, :]                                # (1, B, H)
    return p, h_out


def _reference_forward(x, h, params):
    """Pure-JAX reference replicating torch semantics (for sanity check)."""
    def step(h_prev, x_t):
        h_new = jnp.tanh(x_t @ params["w_ih"].T + params["b_ih"]
                         + h_prev @ params["w_hh"].T + params["b_hh"])
        hid = jnp.maximum(h_new @ params["w1"].T + params["b1"], 0.0)
        p_t = hid @ params["w2"].T + params["b2"]
        return h_new, p_t
    h_last, p_tbo = jax.lax.scan(step, h[0], jnp.transpose(x, (1, 0, 2)))
    return jnp.transpose(p_tbo, (1, 0, 2)), h_last[None]


def init_params(key, n_inputs, n_outputs, n_rnn_hidden, n_fc_hidden):
    ks = jax.random.split(key, 8)
    s_rnn = 1.0 / np.sqrt(n_rnn_hidden)
    s_fc1 = 1.0 / np.sqrt(n_rnn_hidden)
    s_fc2 = 1.0 / np.sqrt(n_fc_hidden)
    u = lambda k, shape, s: jax.random.uniform(k, shape, jnp.float32, -s, s)  # noqa: E731
    return {
        "w_ih": u(ks[0], (n_rnn_hidden, n_inputs), s_rnn),
        "w_hh": u(ks[1], (n_rnn_hidden, n_rnn_hidden), s_rnn),
        "b_ih": u(ks[2], (n_rnn_hidden,), s_rnn),
        "b_hh": u(ks[3], (n_rnn_hidden,), s_rnn),
        "w1":   u(ks[4], (n_fc_hidden, n_rnn_hidden), s_fc1),
        "b1":   u(ks[5], (n_fc_hidden,), s_fc1),
        "w2":   u(ks[6], (n_outputs, n_fc_hidden), s_fc2),
        "b2":   u(ks[7], (n_outputs,), s_fc2),
    }


if __name__ == "__main__":
    # Small shapes consistent with the module's forward.
    B, T = 2, 8
    n_inputs, n_rnn_hidden, n_fc_hidden, n_outputs = 4, 32, 16, 3

    key = jax.random.PRNGKey(0)
    kx, kh, kp = jax.random.split(key, 3)
    x = jax.random.normal(kx, (B, T, n_inputs), jnp.float32)
    h = jax.random.normal(kh, (1, B, n_rnn_hidden), jnp.float32)
    params = init_params(kp, n_inputs, n_outputs, n_rnn_hidden, n_fc_hidden)

    p, h_out = rnn2fc_forward(x, h, params)
    jax.block_until_ready((p, h_out))

    # Sanity check against a pure-JAX f32 reference.  Tolerance is loosened
    # (vs 1e-5) because the recurrence dots use bf16 MXU inputs with f32
    # accumulation, per the performance review.
    p_ref, h_ref = _reference_forward(x, h, params)
    np.testing.assert_allclose(np.asarray(p), np.asarray(p_ref), atol=1e-2, rtol=1e-2)
    np.testing.assert_allclose(np.asarray(h_out), np.asarray(h_ref), atol=1e-2, rtol=1e-2)

    print("KERNEL_OK")
</pallas_src>

<mosaic_0001>
module attributes {stable_mosaic.version = 11 : i64} {
  func.func @kernel(%arg0: i32, %arg1: memref<1x64x4xf32, #tpu.memory_space<vmem>>, %arg2: memref<8x32xf32, #tpu.memory_space<vmem>>, %arg3: memref<4x32xf32, #tpu.memory_space<vmem>>, %arg4: memref<32x32xf32, #tpu.memory_space<vmem>>, %arg5: memref<1x32xf32, #tpu.memory_space<vmem>>, %arg6: memref<32x16xf32, #tpu.memory_space<vmem>>, %arg7: memref<1x16xf32, #tpu.memory_space<vmem>>, %arg8: memref<16x128xf32, #tpu.memory_space<vmem>>, %arg9: memref<1x128xf32, #tpu.memory_space<vmem>>, %arg10: memref<1x64x128xf32, #tpu.memory_space<vmem>>, %arg11: memref<8x32xf32, #tpu.memory_space<vmem>>, %arg12: memref<64x32xf32, #tpu.memory_space<vmem>>) attributes {dimension_semantics = [#tpu.dimension_semantics<parallel>], iteration_bounds = array<i64: 1>, scalar_prefetch = 0 : i64, scratch_operands = 1 : i64, tpu.core_type = #tpu.core_type<tc>, window_params = [{transform_indices = @transform_0, window_bounds = array<i64: 1, 64, 4>}, {transform_indices = @transform_1, window_bounds = array<i64: 8, 32>}, {pipeline_mode = #tpu.pipeline_mode<synchronous>, transform_indices = @transform_2, window_bounds = array<i64: 4, 32>}, {pipeline_mode = #tpu.pipeline_mode<synchronous>, transform_indices = @transform_3, window_bounds = array<i64: 32, 32>}, {pipeline_mode = #tpu.pipeline_mode<synchronous>, transform_indices = @transform_4, window_bounds = array<i64: 1, 32>}, {pipeline_mode = #tpu.pipeline_mode<synchronous>, transform_indices = @transform_5, window_bounds = array<i64: 32, 16>}, {pipeline_mode = #tpu.pipeline_mode<synchronous>, transform_indices = @transform_6, window_bounds = array<i64: 1, 16>}, {pipeline_mode = #tpu.pipeline_mode<synchronous>, transform_indices = @transform_7, window_bounds = array<i64: 16, 128>}, {pipeline_mode = #tpu.pipeline_mode<synchronous>, transform_indices = @transform_8, window_bounds = array<i64: 1, 128>}, {transform_indices = @transform_9, window_bounds = array<i64: 1, 64, 128>}, {transform_indices = @transform_10, window_bounds = array<i64: 8, 32>}]} {
    %c0 = arith.constant 0 : index
    %c0_0 = arith.constant 0 : index
    %c0_1 = arith.constant 0 : index
    %0 = vector.load %arg1[%c0, %c0_0, %c0_1] : memref<1x64x4xf32, #tpu.memory_space<vmem>>, vector<1x64x4xf32>
    %1 = vector.shape_cast %0 : vector<1x64x4xf32> to vector<64x4xf32>
    %2 = arith.truncf %1 : vector<64x4xf32> to vector<64x4xbf16>
    %c0_2 = arith.constant 0 : index
    %c0_3 = arith.constant 0 : index
    %3 = vector.load %arg3[%c0_2, %c0_3] : memref<4x32xf32, #tpu.memory_space<vmem>>, vector<4x32xf32>
    %4 = arith.truncf %3 : vector<4x32xf32> to vector<4x32xbf16>
    %cst = arith.constant dense<0.000000e+00> : vector<64x32xf32>
    %5 = tpu.matmul %2, %4, %cst {dimension_numbers = #tpu.dot_dimension_numbers<[1], [0], [0], [1], [0, 0, 1, 1], [], []>} : vector<64x4xbf16>, vector<4x32xbf16>, vector<64x32xf32> -> vector<64x32xf32>
    %c0_4 = arith.constant 0 : index
    %c0_5 = arith.constant 0 : index
    %6 = vector.load %arg5[%c0_4, %c0_5] : memref<1x32xf32, #tpu.memory_space<vmem>>, vector<1x32xf32>
    %7 = vector.broadcast %6 : vector<1x32xf32> to vector<64x32xf32>
    %8 = arith.addf %5, %7 : vector<64x32xf32>
    %c0_6 = arith.constant 0 : index
    %c0_7 = arith.constant 0 : index
    %9 = vector.load %arg12[%c0_6, %c0_7] : memref<64x32xf32, #tpu.memory_space<vmem>>, vector<64x32xf32>
    tpu.vector_store %arg12[%c0_6, %c0_7], %8 {strides = array<i32>} : memref<64x32xf32, #tpu.memory_space<vmem>>, vector<64x32xf32>,
    %c0_8 = arith.constant 0 : index
    %c0_9 = arith.constant 0 : index
    %10 = vector.load %arg4[%c0_8, %c0_9] : memref<32x32xf32, #tpu.memory_space<vmem>>, vector<32x32xf32>
    %11 = arith.truncf %10 : vector<32x32xf32> to vector<32x32xbf16>
    %c0_10 = arith.constant 0 : index
    %c0_11 = arith.constant 0 : index
    %12 = vector.load %arg6[%c0_10, %c0_11] : memref<32x16xf32, #tpu.memory_space<vmem>>, vector<32x16xf32>
    %c0_12 = arith.constant 0 : index
    %c0_13 = arith.constant 0 : index
    %13 = vector.load %arg7[%c0_12, %c0_13] : memref<1x16xf32, #tpu.memory_space<vmem>>, vector<1x16xf32>
    %c0_14 = arith.constant 0 : index
    %c0_15 = arith.constant 0 : index
    %14 = vector.load %arg8[%c0_14, %c0_15] : memref<16x128xf32, #tpu.memory_space<vmem>>, vector<16x128xf32>
    %c0_16 = arith.constant 0 : index
    %c0_17 = arith.constant 0 : index
    %15 = vector.load %arg9[%c0_16, %c0_17] : memref<1x128xf32, #tpu.memory_space<vmem>>, vector<1x128xf32>
    %c0_18 = arith.constant 0 : index
    %c0_19 = arith.constant 0 : index
    %16 = vector.load %arg2[%c0_18, %c0_19] : memref<8x32xf32, #tpu.memory_space<vmem>>, vector<8x32xf32>
    %c0_20 = arith.constant 0 : index
    %c0_21 = arith.constant 0 : index
    %17 = vector.load %arg12[%c0_20, %c0_21] : memref<64x32xf32, #tpu.memory_space<vmem>>, vector<8x32xf32>
    %18 = arith.truncf %16 : vector<8x32xf32> to vector<8x32xbf16>
    %cst_22 = arith.constant dense<0.000000e+00> : vector<8x32xf32>
    %19 = tpu.matmul %18, %11, %cst_22 {dimension_numbers = #tpu.dot_dimension_numbers<[1], [0], [0], [1], [0, 0, 1, 1], [], []>} : vector<8x32xbf16>, vector<32x32xbf16>, vector<8x32xf32> -> vector<8x32xf32>
    %20 = arith.addf %17, %19 : vector<8x32xf32>
    %21 = math.tanh %20 : vector<8x32xf32>
    %cst_23 = arith.constant dense<0.000000e+00> : vector<8x16xf32>
    %22 = tpu.matmul %21, %12, %cst_23 {dimension_numbers = #tpu.dot_dimension_numbers<[1], [0], [0], [1], [0, 0, 1, 1], [], []>} : vector<8x32xf32>, vector<32x16xf32>, vector<8x16xf32> -> vector<8x16xf32>
    %23 = vector.broadcast %13 : vector<1x16xf32> to vector<8x16xf32>
    %24 = arith.addf %22, %23 : vector<8x16xf32>
    %cst_24 = arith.constant 0.000000e+00 : f32
    %25 = vector.broadcast %cst_24 : f32 to vector<8x16xf32>
    %26 = arith.maximumf %24, %25 : vector<8x16xf32>
    %cst_25 = arith.constant dense<0.000000e+00> : vector<8x128xf32>
    %27 = tpu.matmul %26, %14, %cst_25 {dimension_numbers = #tpu.dot_dimension_numbers<[1], [0], [0], [1], [0, 0, 1, 1], [], []>} : vector<8x16xf32>, vector<16x128xf32>, vector<8x128xf32> -> vector<8x128xf32>
    %28 = vector.broadcast %15 : vector<1x128xf32> to vector<8x128xf32>
    %29 = arith.addf %27, %28 : vector<8x128xf32>
    %c0_26 = arith.constant 0 : index
    %c0_27 = arith.constant 0 : index
    %c0_28 = arith.constant 0 : index
    %30 = vector.load %arg10[%c0_26, %c0_27, %c0_28] : memref<1x64x128xf32, #tpu.memory_space<vmem>>, vector<1x8x128xf32>
    %31 = vector.shape_cast %30 : vector<1x8x128xf32> to vector<8x128xf32>
    %32 = vector.shape_cast %29 : vector<8x128xf32> to vector<1x8x128xf32>
    tpu.vector_store %arg10[%c0_26, %c0_27, %c0_28], %32 {strides = array<i32>} : memref<1x64x128xf32, #tpu.memory_space<vmem>>, vector<1x8x128xf32>,
    %c8 = arith.constant 8 : index
    %c0_29 = arith.constant 0 : index
    %33 = vector.load %arg12[%c8, %c0_29] : memref<64x32xf32, #tpu.memory_space<vmem>>, vector<8x32xf32>
    %34 = arith.truncf %21 : vector<8x32xf32> to vector<8x32xbf16>
    %cst_30 = arith.constant dense<0.000000e+00> : vector<8x32xf32>
    %35 = tpu.matmul %34, %11, %cst_30 {dimension_numbers = #tpu.dot_dimension_numbers<[1], [0], [0], [1], [0, 0, 1, 1], [], []>} : vector<8x32xbf16>, vector<32x32xbf16>, vector<8x32xf32> -> vector<8x32xf32>
    %36 = arith.addf %33, %35 : vector<8x32xf32>
    %37 = math.tanh %36 : vector<8x32xf32>
    %cst_31 = arith.constant dense<0.000000e+00> : vector<8x16xf32>
    %38 = tpu.matmul %37, %12, %cst_31 {dimension_numbers = #tpu.dot_dimension_numbers<[1], [0], [0], [1], [0, 0, 1, 1], [], []>} : vector<8x32xf32>, vector<32x16xf32>, vector<8x16xf32> -> vector<8x16xf32>
    %39 = vector.broadcast %13 : vector<1x16xf32> to vector<8x16xf32>
    %40 = arith.addf %38, %39 : vector<8x16xf32>
    %cst_32 = arith.constant 0.000000e+00 : f32
    %41 = vector.broadcast %cst_32 : f32 to vector<8x16xf32>
    %42 = arith.maximumf %40, %41 : vector<8x16xf32>
    %cst_33 = arith.constant dense<0.000000e+00> : vector<8x128xf32>
    %43 = tpu.matmul %42, %14, %cst_33 {dimension_numbers = #tpu.dot_dimension_numbers<[1], [0], [0], [1], [0, 0, 1, 1], [], []>} : vector<8x16xf32>, vector<16x128xf32>, vector<8x128xf32> -> vector<8x128xf32>
    %44 = vector.broadcast %15 : vector<1x128xf32> to vector<8x128xf32>
    %45 = arith.addf %43, %44 : vector<8x128xf32>
    %c0_34 = arith.constant 0 : index
    %c8_35 = arith.constant 8 : index
    %c0_36 = arith.constant 0 : index
    %46 = vector.load %arg10[%c0_34, %c8_35, %c0_36] : memref<1x64x128xf32, #tpu.memory_space<vmem>>, vector<1x8x128xf32>
    %47 = vector.shape_cast %46 : vector<1x8x128xf32> to vector<8x128xf32>
    %48 = vector.shape_cast %45 : vector<8x128xf32> to vector<1x8x128xf32>
    tpu.vector_store %arg10[%c0_34, %c8_35, %c0_36], %48 {strides = array<i32>} : memref<1x64x128xf32, #tpu.memory_space<vmem>>, vector<1x8x128xf32>,
    %c16 = arith.constant 16 : index
    %c0_37 = arith.constant 0 : index
    %49 = vector.load %arg12[%c16, %c0_37] : memref<64x32xf32, #tpu.memory_space<vmem>>, vector<8x32xf32>
    %50 = arith.truncf %37 : vector<8x32xf32> to vector<8x32xbf16>
    %cst_38 = arith.constant dense<0.000000e+00> : vector<8x32xf32>
    %51 = tpu.matmul %50, %11, %cst_38 {dimension_numbers = #tpu.dot_dimension_numbers<[1], [0], [0], [1], [0, 0, 1, 1], [], []>} : vector<8x32xbf16>, vector<32x32xbf16>, vector<8x32xf32> -> vector<8x32xf32>
    %52 = arith.addf %49, %51 : vector<8x32xf32>
    %53 = math.tanh %52 : vector<8x32xf32>
    %cst_39 = arith.constant dense<0.000000e+00> : vector<8x16xf32>
    %54 = tpu.matmul %53, %12, %cst_39 {dimension_numbers = #tpu.dot_dimension_numbers<[1], [0], [0], [1], [0, 0, 1, 1], [], []>} : vector<8x32xf32>, vector<32x16xf32>, vector<8x16xf32> -> vector<8x16xf32>
    %55 = vector.broadcast %13 : vector<1x16xf32> to vector<8x16xf32>
    %56 = arith.addf %54, %55 : vector<8x16xf32>
    %cst_40 = arith.constant 0.000000e+00 : f32
    %57 = vector.broadcast %cst_40 : f32 to vector<8x16xf32>
    %58 = arith.maximumf %56, %57 : vector<8x16xf32>
    %cst_41 = arith.constant dense<0.000000e+00> : vector<8x128xf32>
    %59 = tpu.matmul %58, %14, %cst_41 {dimension_numbers = #tpu.dot_dimension_numbers<[1], [0], [0], [1], [0, 0, 1, 1], [], []>} : vector<8x16xf32>, vector<16x128xf32>, vector<8x128xf32> -> vector<8x128xf32>
    %60 = vector.broadcast %15 : vector<1x128xf32> to vector<8x128xf32>
    %61 = arith.addf %59, %60 : vector<8x128xf32>
    %c0_42 = arith.constant 0 : index
    %c16_43 = arith.constant 16 : index
    %c0_44 = arith.constant 0 : index
    %62 = vector.load %arg10[%c0_42, %c16_43, %c0_44] : memref<1x64x128xf32, #tpu.memory_space<vmem>>, vector<1x8x128xf32>
    %63 = vector.shape_cast %62 : vector<1x8x128xf32> to vector<8x128xf32>
    %64 = vector.shape_cast %61 : vector<8x128xf32> to vector<1x8x128xf32>
    tpu.vector_store %arg10[%c0_42, %c16_43, %c0_44], %64 {strides = array<i32>} : memref<1x64x128xf32, #tpu.memory_space<vmem>>, vector<1x8x128xf32>,
    %c24 = arith.constant 24 : index
    %c0_45 = arith.constant 0 : index
    %65 = vector.load %arg12[%c24, %c0_45] : memref<64x32xf32, #tpu.memory_space<vmem>>, vector<8x32xf32>
    %66 = arith.truncf %53 : vector<8x32xf32> to vector<8x32xbf16>
    %cst_46 = arith.constant dense<0.000000e+00> : vector<8x32xf32>
    %67 = tpu.matmul %66, %11, %cst_46 {dimension_numbers = #tpu.dot_dimension_numbers<[1], [0], [0], [1], [0, 0, 1, 1], [], []>} : vector<8x32xbf16>, vector<32x32xbf16>, vector<8x32xf32> -> vector<8x32xf32>
    %68 = arith.addf %65, %67 : vector<8x32xf32>
    %69 = math.tanh %68 : vector<8x32xf32>
    %cst_47 = arith.constant dense<0.000000e+00> : vector<8x16xf32>
    %70 = tpu.matmul %69, %12, %cst_47 {dimension_numbers = #tpu.dot_dimension_numbers<[1], [0], [0], [1], [0, 0, 1, 1], [], []>} : vector<8x32xf32>, vector<32x16xf32>, vector<8x16xf32> -> vector<8x16xf32>
    %71 = vector.broadcast %13 : vector<1x16xf32> to vector<8x16xf32>
    %72 = arith.addf %70, %71 : vector<8x16xf32>
    %cst_48 = arith.constant 0.000000e+00 : f32
    %73 = vector.broadcast %cst_48 : f32 to vector<8x16xf32>
    %74 = arith.maximumf %72, %73 : vector<8x16xf32>
    %cst_49 = arith.constant dense<0.000000e+00> : vector<8x128xf32>
    %75 = tpu.matmul %74, %14, %cst_49 {dimension_numbers = #tpu.dot_dimension_numbers<[1], [0], [0], [1], [0, 0, 1, 1], [], []>} : vector<8x16xf32>, vector<16x128xf32>, vector<8x128xf32> -> vector<8x128xf32>
    %76 = vector.broadcast %15 : vector<1x128xf32> to vector<8x128xf32>
    %77 = arith.addf %75, %76 : vector<8x128xf32>
    %c0_50 = arith.constant 0 : index
    %c24_51 = arith.constant 24 : index
    %c0_52 = arith.constant 0 : index
    %78 = vector.load %arg10[%c0_50, %c24_51, %c0_52] : memref<1x64x128xf32, #tpu.memory_space<vmem>>, vector<1x8x128xf32>
    %79 = vector.shape_cast %78 : vector<1x8x128xf32> to vector<8x128xf32>
    %80 = vector.shape_cast %77 : vector<8x128xf32> to vector<1x8x128xf32>
    tpu.vector_store %arg10[%c0_50, %c24_51, %c0_52], %80 {strides = array<i32>} : memref<1x64x128xf32, #tpu.memory_space<vmem>>, vector<1x8x128xf32>,
    %c32 = arith.constant 32 : index
    %c0_53 = arith.constant 0 : index
    %81 = vector.load %arg12[%c32, %c0_53] : memref<64x32xf32, #tpu.memory_space<vmem>>, vector<8x32xf32>
    %82 = arith.truncf %69 : vector<8x32xf32> to vector<8x32xbf16>
    %cst_54 = arith.constant dense<0.000000e+00> : vector<8x32xf32>
    %83 = tpu.matmul %82, %11, %cst_54 {dimension_numbers = #tpu.dot_dimension_numbers<[1], [0], [0], [1], [0, 0, 1, 1], [], []>} : vector<8x32xbf16>, vector<32x32xbf16>, vector<8x32xf32> -> vector<8x32xf32>
    %84 = arith.addf %81, %83 : vector<8x32xf32>
    %85 = math.tanh %84 : vector<8x32xf32>
    %cst_55 = arith.constant dense<0.000000e+00> : vector<8x16xf32>
    %86 = tpu.matmul %85, %12, %cst_55 {dimension_numbers = #tpu.dot_dimension_numbers<[1], [0], [0], [1], [0, 0, 1, 1], [], []>} : vector<8x32xf32>, vector<32x16xf32>, vector<8x16xf32> -> vector<8x16xf32>
    %87 = vector.broadcast %13 : vector<1x16xf32> to vector<8x16xf32>
    %88 = arith.addf %86, %87 : vector<8x16xf32>
    %cst_56 = arith.constant 0.000000e+00 : f32
    %89 = vector.broadcast %cst_56 : f32 to vector<8x16xf32>
    %90 = arith.maximumf %88, %89 : vector<8x16xf32>
    %cst_57 = arith.constant dense<0.000000e+00> : vector<8x128xf32>
    %91 = tpu.matmul %90, %14, %cst_57 {dimension_numbers = #tpu.dot_dimension_numbers<[1], [0], [0], [1], [0, 0, 1, 1], [], []>} : vector<8x16xf32>, vector<16x128xf32>, vector<8x128xf32> -> vector<8x128xf32>
    %92 = vector.broadcast %15 : vector<1x128xf32> to vector<8x128xf32>
    %93 = arith.addf %91, %92 : vector<8x128xf32>
    %c0_58 = arith.constant 0 : index
    %c32_59 = arith.constant 32 : index
    %c0_60 = arith.constant 0 : index
    %94 = vector.load %arg10[%c0_58, %c32_59, %c0_60] : memref<1x64x128xf32, #tpu.memory_space<vmem>>, vector<1x8x128xf32>
    %95 = vector.shape_cast %94 : vector<1x8x128xf32> to vector<8x128xf32>
    %96 = vector.shape_cast %93 : vector<8x128xf32> to vector<1x8x128xf32>
    tpu.vector_store %arg10[%c0_58, %c32_59, %c0_60], %96 {strides = array<i32>} : memref<1x64x128xf32, #tpu.memory_space<vmem>>, vector<1x8x128xf32>,
    %c40 = arith.constant 40 : index
    %c0_61 = arith.constant 0 : index
    %97 = vector.load %arg12[%c40, %c0_61] : memref<64x32xf32, #tpu.memory_space<vmem>>, vector<8x32xf32>
    %98 = arith.truncf %85 : vector<8x32xf32> to vector<8x32xbf16>
    %cst_62 = arith.constant dense<0.000000e+00> : vector<8x32xf32>
    %99 = tpu.matmul %98, %11, %cst_62 {dimension_numbers = #tpu.dot_dimension_numbers<[1], [0], [0], [1], [0, 0, 1, 1], [], []>} : vector<8x32xbf16>, vector<32x32xbf16>, vector<8x32xf32> -> vector<8x32xf32>
    %100 = arith.addf %97, %99 : vector<8x32xf32>
    %101 = math.tanh %100 : vector<8x32xf32>
    %cst_63 = arith.constant dense<0.000000e+00> : vector<8x16xf32>
    %102 = tpu.matmul %101, %12, %cst_63 {dimension_numbers = #tpu.dot_dimension_numbers<[1], [0], [0], [1], [0, 0, 1, 1], [], []>} : vector<8x32xf32>, vector<32x16xf32>, vector<8x16xf32> -> vector<8x16xf32>
    %103 = vector.broadcast %13 : vector<1x16xf32> to vector<8x16xf32>
    %104 = arith.addf %102, %103 : vector<8x16xf32>
    %cst_64 = arith.constant 0.000000e+00 : f32
    %105 = vector.broadcast %cst_64 : f32 to vector<8x16xf32>
    %106 = arith.maximumf %104, %105 : vector<8x16xf32>
    %cst_65 = arith.constant dense<0.000000e+00> : vector<8x128xf32>
    %107 = tpu.matmul %106, %14, %cst_65 {dimension_numbers = #tpu.dot_dimension_numbers<[1], [0], [0], [1], [0, 0, 1, 1], [], []>} : vector<8x16xf32>, vector<16x128xf32>, vector<8x128xf32> -> vector<8x128xf32>
    %108 = vector.broadcast %15 : vector<1x128xf32> to vector<8x128xf32>
    %109 = arith.addf %107, %108 : vector<8x128xf32>
    %c0_66 = arith.constant 0 : index
    %c40_67 = arith.constant 40 : index
    %c0_68 = arith.constant 0 : index
    %110 = vector.load %arg10[%c0_66, %c40_67, %c0_68] : memref<1x64x128xf32, #tpu.memory_space<vmem>>, vector<1x8x128xf32>
    %111 = vector.shape_cast %110 : vector<1x8x128xf32> to vector<8x128xf32>
    %112 = vector.shape_cast %109 : vector<8x128xf32> to vector<1x8x128xf32>
    tpu.vector_store %arg10[%c0_66, %c40_67, %c0_68], %112 {strides = array<i32>} : memref<1x64x128xf32, #tpu.memory_space<vmem>>, vector<1x8x128xf32>,
    %c48 = arith.constant 48 : index
    %c0_69 = arith.constant 0 : index
    %113 = vector.load %arg12[%c48, %c0_69] : memref<64x32xf32, #tpu.memory_space<vmem>>, vector<8x32xf32>
    %114 = arith.truncf %101 : vector<8x32xf32> to vector<8x32xbf16>
    %cst_70 = arith.constant dense<0.000000e+00> : vector<8x32xf32>
    %115 = tpu.matmul %114, %11, %cst_70 {dimension_numbers = #tpu.dot_dimension_numbers<[1], [0], [0], [1], [0, 0, 1, 1], [], []>} : vector<8x32xbf16>, vector<32x32xbf16>, vector<8x32xf32> -> vector<8x32xf32>
    %116 = arith.addf %113, %115 : vector<8x32xf32>
    %117 = math.tanh %116 : vector<8x32xf32>
    %cst_71 = arith.constant dense<0.000000e+00> : vector<8x16xf32>
    %118 = tpu.matmul %117, %12, %cst_71 {dimension_numbers = #tpu.dot_dimension_numbers<[1], [0], [0], [1], [0, 0, 1, 1], [], []>} : vector<8x32xf32>, vector<32x16xf32>, vector<8x16xf32> -> vector<8x16xf32>
    %119 = vector.broadcast %13 : vector<1x16xf32> to vector<8x16xf32>
    %120 = arith.addf %118, %119 : vector<8x16xf32>
    %cst_72 = arith.constant 0.000000e+00 : f32
    %121 = vector.broadcast %cst_72 : f32 to vector<8x16xf32>
    %122 = arith.maximumf %120, %121 : vector<8x16xf32>
    %cst_73 = arith.constant dense<0.000000e+00> : vector<8x128xf32>
    %123 = tpu.matmul %122, %14, %cst_73 {dimension_numbers = #tpu.dot_dimension_numbers<[1], [0], [0], [1], [0, 0, 1, 1], [], []>} : vector<8x16xf32>, vector<16x128xf32>, vector<8x128xf32> -> vector<8x128xf32>
    %124 = vector.broadcast %15 : vector<1x128xf32> to vector<8x128xf32>
    %125 = arith.addf %123, %124 : vector<8x128xf32>
    %c0_74 = arith.constant 0 : index
    %c48_75 = arith.constant 48 : index
    %c0_76 = arith.constant 0 : index
    %126 = vector.load %arg10[%c0_74, %c48_75, %c0_76] : memref<1x64x128xf32, #tpu.memory_space<vmem>>, vector<1x8x128xf32>
    %127 = vector.shape_cast %126 : vector<1x8x128xf32> to vector<8x128xf32>
    %128 = vector.shape_cast %125 : vector<8x128xf32> to vector<1x8x128xf32>
    tpu.vector_store %arg10[%c0_74, %c48_75, %c0_76], %128 {strides = array<i32>} : memref<1x64x128xf32, #tpu.memory_space<vmem>>, vector<1x8x128xf32>,
    %c56 = arith.constant 56 : index
    %c0_77 = arith.constant 0 : index
    %129 = vector.load %arg12[%c56, %c0_77] : memref<64x32xf32, #tpu.memory_space<vmem>>, vector<8x32xf32>
    %130 = arith.truncf %117 : vector<8x32xf32> to vector<8x32xbf16>
    %cst_78 = arith.constant dense<0.000000e+00> : vector<8x32xf32>
    %131 = tpu.matmul %130, %11, %cst_78 {dimension_numbers = #tpu.dot_dimension_numbers<[1], [0], [0], [1], [0, 0, 1, 1], [], []>} : vector<8x32xbf16>, vector<32x32xbf16>, vector<8x32xf32> -> vector<8x32xf32>
    %132 = arith.addf %129, %131 : vector<8x32xf32>
    %133 = math.tanh %132 : vector<8x32xf32>
    %cst_79 = arith.constant dense<0.000000e+00> : vector<8x16xf32>
    %134 = tpu.matmul %133, %12, %cst_79 {dimension_numbers = #tpu.dot_dimension_numbers<[1], [0], [0], [1], [0, 0, 1, 1], [], []>} : vector<8x32xf32>, vector<32x16xf32>, vector<8x16xf32> -> vector<8x16xf32>
    %135 = vector.broadcast %13 : vector<1x16xf32> to vector<8x16xf32>
    %136 = arith.addf %134, %135 : vector<8x16xf32>
    %cst_80 = arith.constant 0.000000e+00 : f32
    %137 = vector.broadcast %cst_80 : f32 to vector<8x16xf32>
    %138 = arith.maximumf %136, %137 : vector<8x16xf32>
    %cst_81 = arith.constant dense<0.000000e+00> : vector<8x128xf32>
    %139 = tpu.matmul %138, %14, %cst_81 {dimension_numbers = #tpu.dot_dimension_numbers<[1], [0], [0], [1], [0, 0, 1, 1], [], []>} : vector<8x16xf32>, vector<16x128xf32>, vector<8x128xf32> -> vector<8x128xf32>
    %140 = vector.broadcast %15 : vector<1x128xf32> to vector<8x128xf32>
    %141 = arith.addf %139, %140 : vector<8x128xf32>
    %c0_82 = arith.constant 0 : index
    %c56_83 = arith.constant 56 : index
    %c0_84 = arith.constant 0 : index
    %142 = vector.load %arg10[%c0_82, %c56_83, %c0_84] : memref<1x64x128xf32, #tpu.memory_space<vmem>>, vector<1x8x128xf32>
    %143 = vector.shape_cast %142 : vector<1x8x128xf32> to vector<8x128xf32>
    %144 = vector.shape_cast %141 : vector<8x128xf32> to vector<1x8x128xf32>
    tpu.vector_store %arg10[%c0_82, %c56_83, %c0_84], %144 {strides = array<i32>} : memref<1x64x128xf32, #tpu.memory_space<vmem>>, vector<1x8x128xf32>,
    %c0_85 = arith.constant 0 : index
    %c0_86 = arith.constant 0 : index
    %145 = vector.load %arg11[%c0_85, %c0_86] : memref<8x32xf32, #tpu.memory_space<vmem>>, vector<8x32xf32>
    tpu.vector_store %arg11[%c0_85, %c0_86], %133 {strides = array<i32>} : memref<8x32xf32, #tpu.memory_space<vmem>>, vector<8x32xf32>,
    return
  }
  func.func @transform_0(%arg0: i32) -> (i32, i32, i32) {
    %c0_i32 = arith.constant 0 : i32
    %c0_i32_0 = arith.constant 0 : i32
    %c0_i32_1 = arith.constant 0 : i32
    return %arg0, %c0_i32, %c0_i32_0 : i32, i32, i32
  }
  func.func @transform_1(%arg0: i32) -> (i32, i32) {
    %c0_i32 = arith.constant 0 : i32
    %c0_i32_0 = arith.constant 0 : i32
    return %arg0, %c0_i32 : i32, i32
  }
  func.func @transform_2(%arg0: i32) -> (i32, i32) {
    %c0_i32 = arith.constant 0 : i32
    %c0_i32_0 = arith.constant 0 : i32
    %c0_i32_1 = arith.constant 0 : i32
    return %c0_i32, %c0_i32_0 : i32, i32
  }
  func.func @transform_3(%arg0: i32) -> (i32, i32) {
    %c0_i32 = arith.constant 0 : i32
    %c0_i32_0 = arith.constant 0 : i32
    %c0_i32_1 = arith.constant 0 : i32
    return %c0_i32, %c0_i32_0 : i32, i32
  }
  func.func @transform_4(%arg0: i32) -> (i32, i32) {
    %c0_i32 = arith.constant 0 : i32
    %c0_i32_0 = arith.constant 0 : i32
    %c0_i32_1 = arith.constant 0 : i32
    return %c0_i32, %c0_i32_0 : i32, i32
  }
  func.func @transform_5(%arg0: i32) -> (i32, i32) {
    %c0_i32 = arith.constant 0 : i32
    %c0_i32_0 = arith.constant 0 : i32
    %c0_i32_1 = arith.constant 0 : i32
    return %c0_i32, %c0_i32_0 : i32, i32
  }
  func.func @transform_6(%arg0: i32) -> (i32, i32) {
    %c0_i32 = arith.constant 0 : i32
    %c0_i32_0 = arith.constant 0 : i32
    %c0_i32_1 = arith.constant 0 : i32
    return %c0_i32, %c0_i32_0 : i32, i32
  }
  func.func @transform_7(%arg0: i32) -> (i32, i32) {
    %c0_i32 = arith.constant 0 : i32
    %c0_i32_0 = arith.constant 0 : i32
    %c0_i32_1 = arith.constant 0 : i32
    return %c0_i32, %c0_i32_0 : i32, i32
  }
  func.func @transform_8(%arg0: i32) -> (i32, i32) {
    %c0_i32 = arith.constant 0 : i32
    %c0_i32_0 = arith.constant 0 : i32
    %c0_i32_1 = arith.constant 0 : i32
    return %c0_i32, %c0_i32_0 : i32, i32
  }
  func.func @transform_9(%arg0: i32) -> (i32, i32, i32) {
    %c0_i32 = arith.constant 0 : i32
    %c0_i32_0 = arith.constant 0 : i32
    %c0_i32_1 = arith.constant 0 : i32
    return %arg0, %c0_i32, %c0_i32_0 : i32, i32, i32
  }
  func.func @transform_10(%arg0: i32) -> (i32, i32) {
    %c0_i32 = arith.constant 0 : i32
    %c0_i32_0 = arith.constant 0 : i32
    return %arg0, %c0_i32 : i32, i32
  }
}

</mosaic_0001>

<llo_original>
// kernel: tpu_custom_call.1
$region0: #{tpu_custom_call.1}
  #allocation0 [shape = 'u32[]', space=smem, size = 0x4, offset = 0x4, fixed_abs, tag = 'smem constant byte address 0x4 - core index']
  #allocation1 [shape = 'u32[144,128]{1,0:T(1,128)}', space=vmem, size = 0x12000, scoped, tag = 'internal scratch']
  #allocation2 [shape = 'f32[64,32]{1,0:T(8,128)}', space=vmem, size = 0x8000, scoped, tag = 'scratch operand']
  %s0 = inlined_call_operand.vmem [shape: f32[1,64,4], index: 0, kind: input, shape index: {}]
  %s1 = inlined_call_operand.vmem [shape: f32[8,32], index: 1, kind: input, shape index: {}]
  %s2 = inlined_call_operand.vmem [shape: f32[4,32], index: 2, kind: input, shape index: {}]
  %s3 = inlined_call_operand.vmem [shape: f32[32,32], index: 3, kind: input, shape index: {}]
  %s4 = inlined_call_operand.vmem [shape: f32[1,32], index: 4, kind: input, shape index: {}]
  %s5 = inlined_call_operand.vmem [shape: f32[32,16], index: 5, kind: input, shape index: {}]
  %s6 = inlined_call_operand.vmem [shape: f32[1,16], index: 6, kind: input, shape index: {}]
  %s7 = inlined_call_operand.vmem [shape: f32[16,128], index: 7, kind: input, shape index: {}]
  %s8 = inlined_call_operand.vmem [shape: f32[1,128], index: 8, kind: input, shape index: {}]
  %s9 = inlined_call_operand.hbm [shape: f32[1,64,128], index: 9, kind: output, shape index: {0}]
  %s10 = inlined_call_operand.hbm [shape: f32[8,32], index: 10, kind: output, shape index: {1}]
  %11 = xla_tuple %s9, %s10
  %s12 = sld [smem:[#allocation0]]
  $region54: #{tpu_custom_call.1} parent=0
    _
  %s14 = ssub.s32 1, %s12
  %s15 = scalar_select 0, %s14, %s12
  $region1: #{tpu_custom_call.1} parent=0
    #allocation3 [shape = 'u8[32768]{0}', space=vmem, size = 0x8000, scoped, tag = 'output window, operand 0, single buffered']
    #allocation4 [shape = 's32[1]{0}', space=sflag, size = 0x4, scoped, tag = 'scoped memory for tpu_custom_call.1']
    #allocation5 [shape = 'u8[4096]{0}', space=vmem, size = 0x1000, scoped, tag = 'output window, operand 1, single buffered']
    #allocation6 [shape = 's32[1]{0}', space=sflag, size = 0x4, scoped, tag = 'scoped memory for tpu_custom_call.1']
    %16 = vsyncpa [#allocation4], 0
    %17 = vsyncpa [#allocation6], 0
    // Predicated region
    $region2: #{tpu_custom_call.1} parent=1 // pred_check
      _
    $region3: #{tpu_custom_call.1} parent=1 // pred_check_branch
      %19 = sbr.rel (0) target = $region5
    $region4: #{tpu_custom_call.1} parent=1 // pred_region
      _
    $region5: #{tpu_custom_call.1} parent=1 // pred_fallthru
      _
    // Predicated region
    $region6: #{tpu_custom_call.1} parent=1 // pred_check
      _
    $region7: #{tpu_custom_call.1} parent=1 // pred_check_branch
      %21 = sbr.rel (0) target = $region9
    $region8: #{tpu_custom_call.1} parent=1 // pred_region
      _
    $region9: #{tpu_custom_call.1} parent=1 // pred_fallthru
      _
    // Predicated region
    $region10: #{tpu_custom_call.1} parent=1 // pred_check
      _
    $region11: #{tpu_custom_call.1} parent=1 // pred_check_branch
      %23 = sbr.rel (0) target = $region13
    $region12: #{tpu_custom_call.1} parent=1 // pred_region
      _
    $region13: #{tpu_custom_call.1} parent=1 // pred_fallthru
      _
    // Predicated region
    $region14: #{tpu_custom_call.1} parent=1 // pred_check
      _
    $region15: #{tpu_custom_call.1} parent=1 // pred_check_branch
      %25 = sbr.rel (0) target = $region17
    $region16: #{tpu_custom_call.1} parent=1 // pred_region
      _
    $region17: #{tpu_custom_call.1} parent=1 // pred_fallthru
      _
    // Predicated region
    $region18: #{tpu_custom_call.1} parent=1 // pred_check
      _
    $region19: #{tpu_custom_call.1} parent=1 // pred_check_branch
      %27 = sbr.rel (0) target = $region21
    $region20: #{tpu_custom_call.1} parent=1 // pred_region
      _
    $region21: #{tpu_custom_call.1} parent=1 // pred_fallthru
      _
    // Predicated region
    $region22: #{tpu_custom_call.1} parent=1 // pred_check
      _
    $region23: #{tpu_custom_call.1} parent=1 // pred_check_branch
      %29 = sbr.rel (0) target = $region25
    $region24: #{tpu_custom_call.1} parent=1 // pred_region
      _
    $region25: #{tpu_custom_call.1} parent=1 // pred_fallthru
      _
    // Predicated region
    $region26: #{tpu_custom_call.1} parent=1 // pred_check
      _
    $region27: #{tpu_custom_call.1} parent=1 // pred_check_branch
      %31 = sbr.rel (0) target = $region29
    $region28: #{tpu_custom_call.1} parent=1 // pred_region
      _
    $region29: #{tpu_custom_call.1} parent=1 // pred_fallthru
      _
    // Predicated region
    $region30: #{tpu_custom_call.1} parent=1 // pred_check
      _
    $region31: #{tpu_custom_call.1} parent=1 // pred_check_branch
      %33 = sbr.rel (0) target = $region33
    $region32: #{tpu_custom_call.1} parent=1 // pred_region
      _
    $region33: #{tpu_custom_call.1} parent=1 // pred_fallthru
      _
    // Predicated region
    $region34: #{tpu_custom_call.1} parent=1 // pred_check
      _
    $region35: #{tpu_custom_call.1} parent=1 // pred_check_branch
      %35 = sbr.rel (0) target = $region37
    $region36: #{tpu_custom_call.1} parent=1 // pred_region
      _
    $region37: #{tpu_custom_call.1} parent=1 // pred_fallthru
      _
    %v37 = vld [vmem:[%s0] sm:$0xff]
    %v38 = vld [vmem:[%s0 + $0x8] sm:$0xff]
    %v39 = vld [vmem:[%s0 + $0x10] sm:$0xff]
    %v40 = vld [vmem:[%s0 + $0x18] sm:$0xff]
    %v41 = vld [vmem:[%s0 + $0x20] sm:$0xff]
    %v42 = vld [vmem:[%s0 + $0x28] sm:$0xff]
    %v43 = vld [vmem:[%s0 + $0x30] sm:$0xff]
    %v44 = vld [vmem:[%s0 + $0x38] sm:$0xff]
    %v45 = vpack.c.bf16 %v38, %v37
    %v46 = vpack.c.bf16 %v40, %v39
    %v47 = vpack.c.bf16 %v42, %v41
    %v48 = vpack.c.bf16 %v44, %v43
    %v49 = vld [vmem:[%s2] sm:$0xf]
    %v50 = vpack.c.bf16 %v49, %v49
    %v51 = vld [vmem:[%s4] sm:$0x1]
    %v53 = vlaneseq
    %v54 = vshrl.u32 %v53, 7
    %v55 = vsub.s32 0, %v54
    %v56 = vrot.slane %v51, %v55
    %vm58 = vcmask 31744
    %v60 = vsel %vm58, %v45, 0
    %v63 = vsel %vm58, %v46, 0
    %v66 = vsel %vm58, %v47, 0
    %v69 = vsel %vm58, %v48, 0
    %vm71 = vcmask 1041408
    %v73 = vsel %vm71, %v50, 0
    %75 = vmatprep.subr.bf16.mxu0 0
    %76 = vmatpush1.bf16.msra.mxu0 0
    %77 = vmatprep.subr.bf16.mxu0 0
    %78 = vmatpush1.bf16.msra.mxu0 0
    %79 = vmatprep.subr.bf16.mxu0 0
    %80 = vmatpush1.bf16.msra.mxu0 0
    %81 = vmatprep.subr.bf16.mxu0 0
    %82 = vmatpush1.bf16.msra.mxu0 0
    %83 = vmatprep.subr.bf16.mxu0 0
    %84 = vmatpush1.bf16.msra.mxu0 0
    %85 = vmatprep.subr.bf16.mxu0 0
    %86 = vmatpush1.bf16.msra.mxu0 0
    %87 = vmatprep.subr.bf16.mxu0 0
    %88 = vmatpush1.bf16.msra.mxu0 0
    %89 = vmatprep.subr.bf16.mxu0 0
    %90 = vmatpush1.bf16.msra.mxu0 %v73
    %91 = vmatprep.subr.bf16.mxu0 0
    %92 = vmatpush2.bf16.msra.mxu0 0
    %93 = vmatprep.subr.bf16.mxu0 0
    %94 = vmatpush2.bf16.msra.mxu0 0
    %95 = vmatprep.subr.bf16.mxu0 0
    %96 = vmatpush2.bf16.msra.mxu0 0
    %97 = vmatprep.subr.bf16.mxu0 0
    %98 = vmatpush2.bf16.msra.mxu0 0
    %99 = vmatprep.subr.bf16.mxu0 0
    %100 = vmatpush2.bf16.msra.mxu0 0
    %101 = vmatprep.subr.bf16.mxu0 0
    %102 = vmatpush2.bf16.msra.mxu0 0
    %103 = vmatprep.subr.bf16.mxu0 0
    %104 = vmatpush2.bf16.msra.mxu0 0
    %105 = vmatprep.subr.bf16.mxu0 0
    %106 = vmatpush2.bf16.msra.mxu0 0
    %107 = vmatprep.mubr.bf16.mxu0 0
    %108 = vmatmul.mubr.bf16.gmra.mxu0 %v60
    %v109 = vpop.f32.mrf.mxu0
    %v110 = vadd.f32 %v56, %v109
    %v111 = vpop.f32.mrf.mxu0
    %v112 = vpop.f32.mrf.mxu0
    %v113 = vadd.f32 %v56, %v112
    %v114 = vpop.f32.mrf.mxu0
    %115 = vmatprep.mubr.bf16.mxu0 0
    %116 = vmatmul.mubr.bf16.gmra.mxu0 %v63
    %v117 = vpop.f32.mrf.mxu0
    %v118 = vadd.f32 %v56, %v117
    %v119 = vpop.f32.mrf.mxu0
    %v120 = vpop.f32.mrf.mxu0
    %v121 = vadd.f32 %v56, %v120
    %v122 = vpop.f32.mrf.mxu0
    %123 = vmatprep.mubr.bf16.mxu0 0
    %124 = vmatmul.mubr.bf16.gmra.mxu0 %v66
    %v125 = vpop.f32.mrf.mxu0
    %v126 = vadd.f32 %v56, %v125
    %v127 = vpop.f32.mrf.mxu0
    %v128 = vpop.f32.mrf.mxu0
    %v129 = vadd.f32 %v56, %v128
    %v130 = vpop.f32.mrf.mxu0
    %131 = vmatprep.mubr.bf16.mxu0 0
    %132 = vmatmul.mubr.bf16.gmra.mxu0 %v69
    %v133 = vpop.f32.mrf.mxu0
    %v134 = vadd.f32 %v56, %v133
    %v135 = vpop.f32.mrf.mxu0
    %v136 = vpop.f32.mrf.mxu0
    %v137 = vadd.f32 %v56, %v136
    %v138 = vpop.f32.mrf.mxu0
    %139 = vdwg.mxu0
    %vm140 = vcmask 261120
    %141 = vst.msk [vmem:[#allocation2] sm:$0xff] %vm140, %v110
    %142 = vst.msk [vmem:[#allocation2 + $0x8] sm:$0xff] %vm140, %v113
    %143 = vst.msk [vmem:[#allocation2 + $0x10] sm:$0xff] %vm140, %v118
    %144 = vst.msk [vmem:[#allocation2 + $0x18] sm:$0xff] %vm140, %v121
    %145 = vst.msk [vmem:[#allocation2 + $0x20] sm:$0xff] %vm140, %v126
    %146 = vst.msk [vmem:[#allocation2 + $0x28] sm:$0xff] %vm140, %v129
    %147 = vst.msk [vmem:[#allocation2 + $0x30] sm:$0xff] %vm140, %v134
    %148 = vst.msk [vmem:[#allocation2 + $0x38] sm:$0xff] %vm140, %v137
    %v149 = vld [vmem:[%s3] sm:$0xff]
    %v150 = vld [vmem:[%s3 + $0x8] sm:$0xff]
    %v151 = vld [vmem:[%s3 + $0x10] sm:$0xff]
    %v152 = vld [vmem:[%s3 + $0x18] sm:$0xff]
    %v153 = vpack.c.bf16 %v150, %v149
    %v154 = vpack.c.bf16 %v152, %v151
    %v155 = vld [vmem:[%s5] sm:$0xff]
    %v156 = vld [vmem:[%s5 + $0x8] sm:$0xff]
    %v157 = vld [vmem:[%s5 + $0x10] sm:$0xff]
    %v158 = vld [vmem:[%s5 + $0x18] sm:$0xff]
    %v159 = vld [vmem:[%s6] sm:$0x1]
    %v160 = vld [vmem:[%s7] sm:$0xff]
    %v161 = vld [vmem:[%s7 + $0x8] sm:$0xff]
    %v162 = vld [vmem:[%s8] sm:$0x1]
    %v163 = vld [vmem:[%s1] sm:$0xff]
    %v164 = vld [vmem:[#allocation2] sm:$0xff]
    %v165 = vpack.c.bf16 %v163, %v163
    %v167 = vsel %vm140, %v165, 0
    %169 = vmatprep.subr.bf16.mxu0 0
    %170 = vmatpush1.bf16.msra.mxu0 0
    %171 = vmatprep.subr.bf16.mxu0 0
    %172 = vmatpush1.bf16.msra.mxu0 0
    %173 = vmatprep.subr.bf16.mxu0 0
    %174 = vmatpush1.bf16.msra.mxu0 0
    %175 = vmatprep.subr.bf16.mxu0 0
    %176 = vmatpush1.bf16.msra.mxu0 0
    %177 = vmatprep.subr.bf16.mxu0 0
    %178 = vmatpush1.bf16.msra.mxu0 0
    %179 = vmatprep.subr.bf16.mxu0 0
    %180 = vmatpush1.bf16.msra.mxu0 0
    %181 = vmatprep.subr.bf16.mxu0 0
    %182 = vmatpush1.bf16.msra.mxu0 %v154
    %183 = vmatprep.subr.bf16.mxu0 0
    %184 = vmatpush1.bf16.msra.mxu0 %v153
    %185 = vmatprep.subr.bf16.mxu0 0
    %186 = vmatpush2.bf16.msra.mxu0 0
    %187 = vmatprep.subr.bf16.mxu0 0
    %188 = vmatpush2.bf16.msra.mxu0 0
    %189 = vmatprep.subr.bf16.mxu0 0
    %190 = vmatpush2.bf16.msra.mxu0 0
    %191 = vmatprep.subr.bf16.mxu0 0
    %192 = vmatpush2.bf16.msra.mxu0 0
    %193 = vmatprep.subr.bf16.mxu0 0
    %194 = vmatpush2.bf16.msra.mxu0 0
    %195 = vmatprep.subr.bf16.mxu0 0
    %196 = vmatpush2.bf16.msra.mxu0 0
    %197 = vmatprep.subr.bf16.mxu0 0
    %198 = vmatpush2.bf16.msra.mxu0 0
    %199 = vmatprep.subr.bf16.mxu0 0
    %200 = vmatpush2.bf16.msra.mxu0 0
    %201 = vmatprep.mubr.bf16.mxu0 0
    %202 = vmatmul.mubr.bf16.gmra.mxu0 %v167
    %v203 = vpop.f32.mrf.mxu0
    %v204 = vadd.f32 0.0, %v203
    %v205 = vpop.f32.mrf.mxu0
    %v206 = vpop.f32.mrf.mxu0
    %v207 = vpop.f32.mrf.mxu0
    %208 = vdwg.mxu0
    %v209 = vadd.f32 %v164, %v204
    %v210 = vtanh.pop %v209
    %v212 = vlaneseq
    %v213 = vshrl.u32 %v212, 7
    %v214 = vsub.s32 0, %v213
    %v215 = vrot.slane %v159, %v214
    %v218 = vsel %vm140, %v210, 0
    %220 = vmatprep.subr.mxu0 0.0
    %221 = vmatpush1.msra.mxu0 0.0
    %222 = vmatprep.subr.mxu0 0.0
    %223 = vmatpush1.msra.mxu0 0.0
    %224 = vmatprep.subr.mxu0 0.0
    %225 = vmatpush1.msra.mxu0 0.0
    %226 = vmatprep.subr.mxu0 0.0
    %227 = vmatpush1.msra.mxu0 0.0
    %228 = vmatprep.subr.mxu0 0.0
    %229 = vmatpush1.msra.mxu0 0.0
    %230 = vmatprep.subr.mxu0 0.0
    %231 = vmatpush1.msra.mxu0 0.0
    %232 = vmatprep.subr.mxu0 0.0
    %233 = vmatpush1.msra.mxu0 0.0
    %234 = vmatprep.subr.mxu0 0.0
    %235 = vmatpush1.msra.mxu0 0.0
    %236 = vmatprep.subr.mxu0 0.0
    %237 = vmatpush1.msra.mxu0 0.0
    %238 = vmatprep.subr.mxu0 0.0
    %239 = vmatpush1.msra.mxu0 0.0
    %240 = vmatprep.subr.mxu0 0.0
    %241 = vmatpush1.msra.mxu0 0.0
    %242 = vmatprep.subr.mxu0 0.0
    %243 = vmatpush1.msra.mxu0 0.0
    %244 = vmatprep.subr.mxu0 0.0
    %245 = vmatpush1.msra.mxu0 %v158
    %246 = vmatprep.subr.mxu0 0.0
    %247 = vmatpush1.msra.mxu0 %v157
    %248 = vmatprep.subr.mxu0 0.0
    %249 = vmatpush1.msra.mxu0 %v156
    %250 = vmatprep.subr.mxu0 0.0
    %251 = vmatpush1.msra.mxu0 %v155
    %252 = vmatprep.subr.mxu0 0.0
    %253 = vmatpush2.msra.mxu0 0.0
    %254 = vmatprep.subr.mxu0 0.0
    %255 = vmatpush2.msra.mxu0 0.0
    %256 = vmatprep.subr.mxu0 0.0
    %257 = vmatpush2.msra.mxu0 0.0
    %258 = vmatprep.subr.mxu0 0.0
    %259 = vmatpush2.msra.mxu0 0.0
    %260 = vmatprep.subr.mxu0 0.0
    %261 = vmatpush2.msra.mxu0 0.0
    %262 = vmatprep.subr.mxu0 0.0
    %263 = vmatpush2.msra.mxu0 0.0
    %264 = vmatprep.subr.mxu0 0.0
    %265 = vmatpush2.msra.mxu0 0.0
    %266 = vmatprep.subr.mxu0 0.0
    %267 = vmatpush2.msra.mxu0 0.0
    %268 = vmatprep.subr.mxu0 0.0
    %269 = vmatpush2.msra.mxu0 0.0
    %270 = vmatprep.subr.mxu0 0.0
    %271 = vmatpush2.msra.mxu0 0.0
    %272 = vmatprep.subr.mxu0 0.0
    %273 = vmatpush2.msra.mxu0 0.0
    %274 = vmatprep.subr.mxu0 0.0
    %275 = vmatpush2.msra.mxu0 0.0
    %276 = vmatprep.subr.mxu0 0.0
    %277 = vmatpush2.msra.mxu0 0.0
    %278 = vmatprep.subr.mxu0 0.0
    %279 = vmatpush2.msra.mxu0 0.0
    %280 = vmatprep.subr.mxu0 0.0
    %281 = vmatpush2.msra.mxu0 0.0
    %282 = vmatprep.subr.mxu0 0.0
    %283 = vmatpush2.msra.mxu0 0.0
    %284 = vmatprep.mubr.f32.mxu0 0.0
    %285 = vmatmul.mubr.f32.gmra.mxu0 %v218
    %v286 = vpop.f32.mrf.mxu0
    %v287 = vadd.f32 %v215, %v286
    %v288 = vpop.f32.mrf.mxu0
    %289 = vdwg.mxu0
    %v290 = vmax.f32 %v287, 0.0
    %v292 = vlaneseq
    %v293 = vshrl.u32 %v292, 7
    %v294 = vsub.s32 0, %v293
    %v295 = vrot.slane %v162, %v294
    %vm297 = vcmask 130048
    %v299 = vsel %vm297, %v290, 0
    %301 = vmatprep.subr.mxu0 0.0
    %302 = vmatpush1.msra.mxu0 0.0
    %303 = vmatprep.subr.mxu0 0.0
    %304 = vmatpush1.msra.mxu0 0.0
    %305 = vmatprep.subr.mxu0 0.0
    %306 = vmatpush1.msra.mxu0 0.0
    %307 = vmatprep.subr.mxu0 0.0
    %308 = vmatpush1.msra.mxu0 0.0
    %309 = vmatprep.subr.mxu0 0.0
    %310 = vmatpush1.msra.mxu0 0.0
    %311 = vmatprep.subr.mxu0 0.0
    %312 = vmatpush1.msra.mxu0 0.0
    %313 = vmatprep.subr.mxu0 0.0
    %314 = vmatpush1.msra.mxu0 0.0
    %315 = vmatprep.subr.mxu0 0.0
    %316 = vmatpush1.msra.mxu0 0.0
    %317 = vmatprep.subr.mxu0 0.0
    %318 = vmatpush1.msra.mxu0 0.0
    %319 = vmatprep.subr.mxu0 0.0
    %320 = vmatpush1.msra.mxu0 0.0
    %321 = vmatprep.subr.mxu0 0.0
    %322 = vmatpush1.msra.mxu0 0.0
    %323 = vmatprep.subr.mxu0 0.0
    %324 = vmatpush1.msra.mxu0 0.0
    %325 = vmatprep.subr.mxu0 0.0
    %326 = vmatpush1.msra.mxu0 0.0
    %327 = vmatprep.subr.mxu0 0.0
    %328 = vmatpush1.msra.mxu0 0.0
    %329 = vmatprep.subr.mxu0 0.0
    %330 = vmatpush1.msra.mxu0 %v161
    %331 = vmatprep.subr.mxu0 0.0
    %332 = vmatpush1.msra.mxu0 %v160
    %333 = vmatprep.subr.mxu0 0.0
    %334 = vmatpush2.msra.mxu0 0.0
    %335 = vmatprep.subr.mxu0 0.0
    %336 = vmatpush2.msra.mxu0 0.0
    %337 = vmatprep.subr.mxu0 0.0
    %338 = vmatpush2.msra.mxu0 0.0
    %339 = vmatprep.subr.mxu0 0.0
    %340 = vmatpush2.msra.mxu0 0.0
    %341 = vmatprep.subr.mxu0 0.0
    %342 = vmatpush2.msra.mxu0 0.0
    %343 = vmatprep.subr.mxu0 0.0
    %344 = vmatpush2.msra.mxu0 0.0
    %345 = vmatprep.subr.mxu0 0.0
    %346 = vmatpush2.msra.mxu0 0.0
    %347 = vmatprep.subr.mxu0 0.0
    %348 = vmatpush2.msra.mxu0 0.0
    %349 = vmatprep.subr.mxu0 0.0
    %350 = vmatpush2.msra.mxu0 0.0
    %351 = vmatprep.subr.mxu0 0.0
    %352 = vmatpush2.msra.mxu0 0.0
    %353 = vmatprep.subr.mxu0 0.0
    %354 = vmatpush2.msra.mxu0 0.0
    %355 = vmatprep.subr.mxu0 0.0
    %356 = vmatpush2.msra.mxu0 0.0
    %357 = vmatprep.subr.mxu0 0.0
    %358 = vmatpush2.msra.mxu0 0.0
    %359 = vmatprep.subr.mxu0 0.0
    %360 = vmatpush2.msra.mxu0 0.0
    %361 = vmatprep.subr.mxu0 0.0
    %362 = vmatpush2.msra.mxu0 0.0
    %363 = vmatprep.subr.mxu0 0.0
    %364 = vmatpush2.msra.mxu0 0.0
    %365 = vmatprep.mubr.f32.mxu0 0.0
    %366 = vmatmul.mubr.f32.gmra.mxu0 %v299
    %v367 = vpop.f32.mrf.mxu0
    %v368 = vadd.f32 %v295, %v367
    %v369 = vpop.f32.mrf.mxu0
    %370 = vdwg.mxu0
    %371 = vst [vmem:[#allocation3] sm:$0xff] %v368
    %v372 = vld [vmem:[#allocation2 + $0x8] sm:$0xff]
    %v373 = vpack.c.bf16 %v210, %v210
    %v375 = vsel %vm140, %v373, 0
    %377 = vmatprep.subr.bf16.mxu0 0
    %378 = vmatpush1.bf16.msra.mxu0 0
    %379 = vmatprep.subr.bf16.mxu0 0
    %380 = vmatpush1.bf16.msra.mxu0 0
    %381 = vmatprep.subr.bf16.mxu0 0
    %382 = vmatpush1.bf16.msra.mxu0 0
    %383 = vmatprep.subr.bf16.mxu0 0
    %384 = vmatpush1.bf16.msra.mxu0 0
    %385 = vmatprep.subr.bf16.mxu0 0
    %386 = vmatpush1.bf16.msra.mxu0 0
    %387 = vmatprep.subr.bf16.mxu0 0
    %388 = vmatpush1.bf16.msra.mxu0 0
    %389 = vmatprep.subr.bf16.mxu0 0
    %390 = vmatpush1.bf16.msra.mxu0 %v154
    %391 = vmatprep.subr.bf16.mxu0 0
    %392 = vmatpush1.bf16.msra.mxu0 %v153
    %393 = vmatprep.subr.bf16.mxu0 0
    %394 = vmatpush2.bf16.msra.mxu0 0
    %395 = vmatprep.subr.bf16.mxu0 0
    %396 = vmatpush2.bf16.msra.mxu0 0
    %397 = vmatprep.subr.bf16.mxu0 0
    %398 = vmatpush2.bf16.msra.mxu0 0
    %399 = vmatprep.subr.bf16.mxu0 0
    %400 = vmatpush2.bf16.msra.mxu0 0
    %401 = vmatprep.subr.bf16.mxu0 0
    %402 = vmatpush2.bf16.msra.mxu0 0
    %403 = vmatprep.subr.bf16.mxu0 0
    %404 = vmatpush2.bf16.msra.mxu0 0
    %405 = vmatprep.subr.bf16.mxu0 0
    %406 = vmatpush2.bf16.msra.mxu0 0
    %407 = vmatprep.subr.bf16.mxu0 0
    %408 = vmatpush2.bf16.msra.mxu0 0
    %409 = vmatprep.mubr.bf16.mxu0 0
    %410 = vmatmul.mubr.bf16.gmra.mxu0 %v375
    %v411 = vpop.f32.mrf.mxu0
    %v412 = vadd.f32 0.0, %v411
    %v413 = vpop.f32.mrf.mxu0
    %v414 = vpop.f32.mrf.mxu0
    %v415 = vpop.f32.mrf.mxu0
    %416 = vdwg.mxu0
    %v417 = vadd.f32 %v372, %v412
    %v418 = vtanh.pop %v417
    %v420 = vsel %vm140, %v418, 0
    %422 = vmatprep.subr.mxu0 0.0
    %423 = vmatpush1.msra.mxu0 0.0
    %424 = vmatprep.subr.mxu0 0.0
    %425 = vmatpush1.msra.mxu0 0.0
    %426 = vmatprep.subr.mxu0 0.0
    %427 = vmatpush1.msra.mxu0 0.0
    %428 = vmatprep.subr.mxu0 0.0
    %429 = vmatpush1.msra.mxu0 0.0
    %430 = vmatprep.subr.mxu0 0.0
    %431 = vmatpush1.msra.mxu0 0.0
    %432 = vmatprep.subr.mxu0 0.0
    %433 = vmatpush1.msra.mxu0 0.0
    %434 = vmatprep.subr.mxu0 0.0
    %435 = vmatpush1.msra.mxu0 0.0
    %436 = vmatprep.subr.mxu0 0.0
    %437 = vmatpush1.msra.mxu0 0.0
    %438 = vmatprep.subr.mxu0 0.0
    %439 = vmatpush1.msra.mxu0 0.0
    %440 = vmatprep.subr.mxu0 0.0
    %441 = vmatpush1.msra.mxu0 0.0
    %442 = vmatprep.subr.mxu0 0.0
    %443 = vmatpush1.msra.mxu0 0.0
    %444 = vmatprep.subr.mxu0 0.0
    %445 = vmatpush1.msra.mxu0 0.0
    %446 = vmatprep.subr.mxu0 0.0
    %447 = vmatpush1.msra.mxu0 %v158
    %448 = vmatprep.subr.mxu0 0.0
    %449 = vmatpush1.msra.mxu0 %v157
    %450 = vmatprep.subr.mxu0 0.0
    %451 = vmatpush1.msra.mxu0 %v156
    %452 = vmatprep.subr.mxu0 0.0
    %453 = vmatpush1.msra.mxu0 %v155
    %454 = vmatprep.subr.mxu0 0.0
    %455 = vmatpush2.msra.mxu0 0.0
    %456 = vmatprep.subr.mxu0 0.0
    %457 = vmatpush2.msra.mxu0 0.0
    %458 = vmatprep.subr.mxu0 0.0
    %459 = vmatpush2.msra.mxu0 0.0
    %460 = vmatprep.subr.mxu0 0.0
    %461 = vmatpush2.msra.mxu0 0.0
    %462 = vmatprep.subr.mxu0 0.0
    %463 = vmatpush2.msra.mxu0 0.0
    %464 = vmatprep.subr.mxu0 0.0
    %465 = vmatpush2.msra.mxu0 0.0
    %466 = vmatprep.subr.mxu0 0.0
    %467 = vmatpush2.msra.mxu0 0.0
    %468 = vmatprep.subr.mxu0 0.0
    %469 = vmatpush2.msra.mxu0 0.0
    %470 = vmatprep.subr.mxu0 0.0
    %471 = vmatpush2.msra.mxu0 0.0
    %472 = vmatprep.subr.mxu0 0.0
    %473 = vmatpush2.msra.mxu0 0.0
    %474 = vmatprep.subr.mxu0 0.0
    %475 = vmatpush2.msra.mxu0 0.0
    %476 = vmatprep.subr.mxu0 0.0
    %477 = vmatpush2.msra.mxu0 0.0
    %478 = vmatprep.subr.mxu0 0.0
    %479 = vmatpush2.msra.mxu0 0.0
    %480 = vmatprep.subr.mxu0 0.0
    %481 = vmatpush2.msra.mxu0 0.0
    %482 = vmatprep.subr.mxu0 0.0
    %483 = vmatpush2.msra.mxu0 0.0
    %484 = vmatprep.subr.mxu0 0.0
    %485 = vmatpush2.msra.mxu0 0.0
    %486 = vmatprep.mubr.f32.mxu0 0.0
    %487 = vmatmul.mubr.f32.gmra.mxu0 %v420
    %v488 = vpop.f32.mrf.mxu0
    %v489 = vadd.f32 %v215, %v488
    %v490 = vpop.f32.mrf.mxu0
    %491 = vdwg.mxu0
    %v492 = vmax.f32 %v489, 0.0
    %v494 = vsel %vm297, %v492, 0
    %496 = vmatprep.subr.mxu0 0.0
    %497 = vmatpush1.msra.mxu0 0.0
    %498 = vmatprep.subr.mxu0 0.0
    %499 = vmatpush1.msra.mxu0 0.0
    %500 = vmatprep.subr.mxu0 0.0
    %501 = vmatpush1.msra.mxu0 0.0
    %502 = vmatprep.subr.mxu0 0.0
    %503 = vmatpush1.msra.mxu0 0.0
    %504 = vmatprep.subr.mxu0 0.0
    %505 = vmatpush1.msra.mxu0 0.0
    %506 = vmatprep.subr.mxu0 0.0
    %507 = vmatpush1.msra.mxu0 0.0
    %508 = vmatprep.subr.mxu0 0.0
    %509 = vmatpush1.msra.mxu0 0.0
    %510 = vmatprep.subr.mxu0 0.0
    %511 = vmatpush1.msra.mxu0 0.0
    %512 = vmatprep.subr.mxu0 0.0
    %513 = vmatpush1.msra.mxu0 0.0
    %514 = vmatprep.subr.mxu0 0.0
    %515 = vmatpush1.msra.mxu0 0.0
    %516 = vmatprep.subr.mxu0 0.0
    %517 = vmatpush1.msra.mxu0 0.0
    %518 = vmatprep.subr.mxu0 0.0
    %519 = vmatpush1.msra.mxu0 0.0
    %520 = vmatprep.subr.mxu0 0.0
    %521 = vmatpush1.msra.mxu0 0.0
    %522 = vmatprep.subr.mxu0 0.0
    %523 = vmatpush1.msra.mxu0 0.0
    %524 = vmatprep.subr.mxu0 0.0
    %525 = vmatpush1.msra.mxu0 %v161
    %526 = vmatprep.subr.mxu0 0.0
    %527 = vmatpush1.msra.mxu0 %v160
    %528 = vmatprep.subr.mxu0 0.0
    %529 = vmatpush2.msra.mxu0 0.0
    %530 = vmatprep.subr.mxu0 0.0
    %531 = vmatpush2.msra.mxu0 0.0
    %532 = vmatprep.subr.mxu0 0.0
    %533 = vmatpush2.msra.mxu0 0.0
    %534 = vmatprep.subr.mxu0 0.0
    %535 = vmatpush2.msra.mxu0 0.0
    %536 = vmatprep.subr.mxu0 0.0
    %537 = vmatpush2.msra.mxu0 0.0
    %538 = vmatprep.subr.mxu0 0.0
    %539 = vmatpush2.msra.mxu0 0.0
    %540 = vmatprep.subr.mxu0 0.0
    %541 = vmatpush2.msra.mxu0 0.0
    %542 = vmatprep.subr.mxu0 0.0
    %543 = vmatpush2.msra.mxu0 0.0
    %544 = vmatprep.subr.mxu0 0.0
    %545 = vmatpush2.msra.mxu0 0.0
    %546 = vmatprep.subr.mxu0 0.0
    %547 = vmatpush2.msra.mxu0 0.0
    %548 = vmatprep.subr.mxu0 0.0
    %549 = vmatpush2.msra.mxu0 0.0
    %550 = vmatprep.subr.mxu0 0.0
    %551 = vmatpush2.msra.mxu0 0.0
    %552 = vmatprep.subr.mxu0 0.0
    %553 = vmatpush2.msra.mxu0 0.0
    %554 = vmatprep.subr.mxu0 0.0
    %555 = vmatpush2.msra.mxu0 0.0
    %556 = vmatprep.subr.mxu0 0.0
    %557 = vmatpush2.msra.mxu0 0.0
    %558 = vmatprep.subr.mxu0 0.0
    %559 = vmatpush2.msra.mxu0 0.0
    %560 = vmatprep.mubr.f32.mxu0 0.0
    %561 = vmatmul.mubr.f32.gmra.mxu0 %v494
    %v562 = vpop.f32.mrf.mxu0
    %v563 = vadd.f32 %v295, %v562
    %v564 = vpop.f32.mrf.mxu0
    %565 = vdwg.mxu0
    %566 = vst [vmem:[#allocation3 + $0x8] sm:$0xff] %v563
    %v567 = vld [vmem:[#allocation2 + $0x10] sm:$0xff]
    %v568 = vpack.c.bf16 %v418, %v418
    %v570 = vsel %vm140, %v568, 0
    %572 = vmatprep.subr.bf16.mxu0 0
    %573 = vmatpush1.bf16.msra.mxu0 0
    %574 = vmatprep.subr.bf16.mxu0 0
    %575 = vmatpush1.bf16.msra.mxu0 0
    %576 = vmatprep.subr.bf16.mxu0 0
    %577 = vmatpush1.bf16.msra.mxu0 0
    %578 = vmatprep.subr.bf16.mxu0 0
    %579 = vmatpush1.bf16.msra.mxu0 0
    %580 = vmatprep.subr.bf16.mxu0 0
    %581 = vmatpush1.bf16.msra.mxu0 0
    %582 = vmatprep.subr.bf16.mxu0 0
    %583 = vmatpush1.bf16.msra.mxu0 0
    %584 = vmatprep.subr.bf16.mxu0 0
    %585 = vmatpush1.bf16.msra.mxu0 %v154
    %586 = vmatprep.subr.bf16.mxu0 0
    %587 = vmatpush1.bf16.msra.mxu0 %v153
    %588 = vmatprep.subr.bf16.mxu0 0
    %589 = vmatpush2.bf16.msra.mxu0 0
    %590 = vmatprep.subr.bf16.mxu0 0
    %591 = vmatpush2.bf16.msra.mxu0 0
    %592 = vmatprep.subr.bf16.mxu0 0
    %593 = vmatpush2.bf16.msra.mxu0 0
    %594 = vmatprep.subr.bf16.mxu0 0
    %595 = vmatpush2.bf16.msra.mxu0 0
    %596 = vmatprep.subr.bf16.mxu0 0
    %597 = vmatpush2.bf16.msra.mxu0 0
    %598 = vmatprep.subr.bf16.mxu0 0
    %599 = vmatpush2.bf16.msra.mxu0 0
    %600 = vmatprep.subr.bf16.mxu0 0
    %601 = vmatpush2.bf16.msra.mxu0 0
    %602 = vmatprep.subr.bf16.mxu0 0
    %603 = vmatpush2.bf16.msra.mxu0 0
    %604 = vmatprep.mubr.bf16.mxu0 0
    %605 = vmatmul.mubr.bf16.gmra.mxu0 %v570
    %v606 = vpop.f32.mrf.mxu0
    %v607 = vadd.f32 0.0, %v606
    %v608 = vpop.f32.mrf.mxu0
    %v609 = vpop.f32.mrf.mxu0
    %v610 = vpop.f32.mrf.mxu0
    %611 = vdwg.mxu0
    %v612 = vadd.f32 %v567, %v607
    %v613 = vtanh.pop %v612
    %v615 = vsel %vm140, %v613, 0
    %617 = vmatprep.subr.mxu0 0.0
    %618 = vmatpush1.msra.mxu0 0.0
    %619 = vmatprep.subr.mxu0 0.0
    %620 = vmatpush1.msra.mxu0 0.0
    %621 = vmatprep.subr.mxu0 0.0
    %622 = vmatpush1.msra.mxu0 0.0
    %623 = vmatprep.subr.mxu0 0.0
    %624 = vmatpush1.msra.mxu0 0.0
    %625 = vmatprep.subr.mxu0 0.0
    %626 = vmatpush1.msra.mxu0 0.0
    %627 = vmatprep.subr.mxu0 0.0
    %628 = vmatpush1.msra.mxu0 0.0
    %629 = vmatprep.subr.mxu0 0.0
    %630 = vmatpush1.msra.mxu0 0.0
    %631 = vmatprep.subr.mxu0 0.0
    %632 = vmatpush1.msra.mxu0 0.0
    %633 = vmatprep.subr.mxu0 0.0
    %634 = vmatpush1.msra.mxu0 0.0
    %635 = vmatprep.subr.mxu0 0.0
    %636 = vmatpush1.msra.mxu0 0.0
    %637 = vmatprep.subr.mxu0 0.0
    %638 = vmatpush1.msra.mxu0 0.0
    %639 = vmatprep.subr.mxu0 0.0
    %640 = vmatpush1.msra.mxu0 0.0
    %641 = vmatprep.subr.mxu0 0.0
    %642 = vmatpush1.msra.mxu0 %v158
    %643 = vmatprep.subr.mxu0 0.0
    %644 = vmatpush1.msra.mxu0 %v157
    %645 = vmatprep.subr.mxu0 0.0
    %646 = vmatpush1.msra.mxu0 %v156
    %647 = vmatprep.subr.mxu0 0.0
    %648 = vmatpush1.msra.mxu0 %v155
    %649 = vmatprep.subr.mxu0 0.0
    %650 = vmatpush2.msra.mxu0 0.0
    %651 = vmatprep.subr.mxu0 0.0
    %652 = vmatpush2.msra.mxu0 0.0
    %653 = vmatprep.subr.mxu0 0.0
    %654 = vmatpush2.msra.mxu0 0.0
    %655 = vmatprep.subr.mxu0 0.0
    %656 = vmatpush2.msra.mxu0 0.0
    %657 = vmatprep.subr.mxu0 0.0
    %658 = vmatpush2.msra.mxu0 0.0
    %659 = vmatprep.subr.mxu0 0.0
    %660 = vmatpush2.msra.mxu0 0.0
    %661 = vmatprep.subr.mxu0 0.0
    %662 = vmatpush2.msra.mxu0 0.0
    %663 = vmatprep.subr.mxu0 0.0
    %664 = vmatpush2.msra.mxu0 0.0
    %665 = vmatprep.subr.mxu0 0.0
    %666 = vmatpush2.msra.mxu0 0.0
    %667 = vmatprep.subr.mxu0 0.0
    %668 = vmatpush2.msra.mxu0 0.0
    %669 = vmatprep.subr.mxu0 0.0
    %670 = vmatpush2.msra.mxu0 0.0
    %671 = vmatprep.subr.mxu0 0.0
    %672 = vmatpush2.msra.mxu0 0.0
    %673 = vmatprep.subr.mxu0 0.0
    %674 = vmatpush2.msra.mxu0 0.0
    %675 = vmatprep.subr.mxu0 0.0
    %676 = vmatpush2.msra.mxu0 0.0
    %677 = vmatprep.subr.mxu0 0.0
    %678 = vmatpush2.msra.mxu0 0.0
    %679 = vmatprep.subr.mxu0 0.0
    %680 = vmatpush2.msra.mxu0 0.0
    %681 = vmatprep.mubr.f32.mxu0 0.0
    %682 = vmatmul.mubr.f32.gmra.mxu0 %v615
    %v683 = vpop.f32.mrf.mxu0
    %v684 = vadd.f32 %v215, %v683
    %v685 = vpop.f32.mrf.mxu0
    %686 = vdwg.mxu0
    %v687 = vmax.f32 %v684, 0.0
    %v689 = vsel %vm297, %v687, 0
    %691 = vmatprep.subr.mxu0 0.0
    %692 = vmatpush1.msra.mxu0 0.0
    %693 = vmatprep.subr.mxu0 0.0
    %694 = vmatpush1.msra.mxu0 0.0
    %695 = vmatprep.subr.mxu0 0.0
    %696 = vmatpush1.msra.mxu0 0.0
    %697 = vmatprep.subr.mxu0 0.0
    %698 = vmatpush1.msra.mxu0 0.0
    %699 = vmatprep.subr.mxu0 0.0
    %700 = vmatpush1.msra.mxu0 0.0
    %701 = vmatprep.subr.mxu0 0.0
    %702 = vmatpush1.msra.mxu0 0.0
    %703 = vmatprep.subr.mxu0 0.0
    %704 = vmatpush1.msra.mxu0 0.0
    %705 = vmatprep.subr.mxu0 0.0
    %706 = vmatpush1.msra.mxu0 0.0
    %707 = vmatprep.subr.mxu0 0.0
    %708 = vmatpush1.msra.mxu0 0.0
    %709 = vmatprep.subr.mxu0 0.0
    %710 = vmatpush1.msra.mxu0 0.0
    %711 = vmatprep.subr.mxu0 0.0
    %712 = vmatpush1.msra.mxu0 0.0
    %713 = vmatprep.subr.mxu0 0.0
    %714 = vmatpush1.msra.mxu0 0.0
    %715 = vmatprep.subr.mxu0 0.0
    %716 = vmatpush1.msra.mxu0 0.0
    %717 = vmatprep.subr.mxu0 0.0
    %718 = vmatpush1.msra.mxu0 0.0
    %719 = vmatprep.subr.mxu0 0.0
    %720 = vmatpush1.msra.mxu0 %v161
    %721 = vmatprep.subr.mxu0 0.0
    %722 = vmatpush1.msra.mxu0 %v160
    %723 = vmatprep.subr.mxu0 0.0
    %724 = vmatpush2.msra.mxu0 0.0
    %725 = vmatprep.subr.mxu0 0.0
    %726 = vmatpush2.msra.mxu0 0.0
    %727 = vmatprep.subr.mxu0 0.0
    %728 = vmatpush2.msra.mxu0 0.0
    %729 = vmatprep.subr.mxu0 0.0
    %730 = vmatpush2.msra.mxu0 0.0
    %731 = vmatprep.subr.mxu0 0.0
    %732 = vmatpush2.msra.mxu0 0.0
    %733 = vmatprep.subr.mxu0 0.0
    %734 = vmatpush2.msra.mxu0 0.0
    %735 = vmatprep.subr.mxu0 0.0
    %736 = vmatpush2.msra.mxu0 0.0
    %737 = vmatprep.subr.mxu0 0.0
    %738 = vmatpush2.msra.mxu0 0.0
    %739 = vmatprep.subr.mxu0 0.0
    %740 = vmatpush2.msra.mxu0 0.0
    %741 = vmatprep.subr.mxu0 0.0
    %742 = vmatpush2.msra.mxu0 0.0
    %743 = vmatprep.subr.mxu0 0.0
    %744 = vmatpush2.msra.mxu0 0.0
    %745 = vmatprep.subr.mxu0 0.0
    %746 = vmatpush2.msra.mxu0 0.0
    %747 = vmatprep.subr.mxu0 0.0
    %748 = vmatpush2.msra.mxu0 0.0
    %749 = vmatprep.subr.mxu0 0.0
    %750 = vmatpush2.msra.mxu0 0.0
    %751 = vmatprep.subr.mxu0 0.0
    %752 = vmatpush2.msra.mxu0 0.0
    %753 = vmatprep.subr.mxu0 0.0
    %754 = vmatpush2.msra.mxu0 0.0
    %755 = vmatprep.mubr.f32.mxu0 0.0
    %756 = vmatmul.mubr.f32.gmra.mxu0 %v689
    %v757 = vpop.f32.mrf.mxu0
    %v758 = vadd.f32 %v295, %v757
    %v759 = vpop.f32.mrf.mxu0
    %760 = vdwg.mxu0
    %761 = vst [vmem:[#allocation3 + $0x10] sm:$0xff] %v758
    %v762 = vld [vmem:[#allocation2 + $0x18] sm:$0xff]
    %v763 = vpack.c.bf16 %v613, %v613
    %v765 = vsel %vm140, %v763, 0
    %767 = vmatprep.subr.bf16.mxu0 0
    %768 = vmatpush1.bf16.msra.mxu0 0
    %769 = vmatprep.subr.bf16.mxu0 0
    %770 = vmatpush1.bf16.msra.mxu0 0
    %771 = vmatprep.subr.bf16.mxu0 0
    %772 = vmatpush1.bf16.msra.mxu0 0
    %773 = vmatprep.subr.bf16.mxu0 0
    %774 = vmatpush1.bf16.msra.mxu0 0
    %775 = vmatprep.subr.bf16.mxu0 0
    %776 = vmatpush1.bf16.msra.mxu0 0
    %777 = vmatprep.subr.bf16.mxu0 0
    %778 = vmatpush1.bf16.msra.mxu0 0
    %779 = vmatprep.subr.bf16.mxu0 0
    %780 = vmatpush1.bf16.msra.mxu0 %v154
    %781 = vmatprep.subr.bf16.mxu0 0
    %782 = vmatpush1.bf16.msra.mxu0 %v153
    %783 = vmatprep.subr.bf16.mxu0 0
    %784 = vmatpush2.bf16.msra.mxu0 0
    %785 = vmatprep.subr.bf16.mxu0 0
    %786 = vmatpush2.bf16.msra.mxu0 0
    %787 = vmatprep.subr.bf16.mxu0 0
    %788 = vmatpush2.bf16.msra.mxu0 0
    %789 = vmatprep.subr.bf16.mxu0 0
    %790 = vmatpush2.bf16.msra.mxu0 0
    %791 = vmatprep.subr.bf16.mxu0 0
    %792 = vmatpush2.bf16.msra.mxu0 0
    %793 = vmatprep.subr.bf16.mxu0 0
    %794 = vmatpush2.bf16.msra.mxu0 0
    %795 = vmatprep.subr.bf16.mxu0 0
    %796 = vmatpush2.bf16.msra.mxu0 0
    %797 = vmatprep.subr.bf16.mxu0 0
    %798 = vmatpush2.bf16.msra.mxu0 0
    %799 = vmatprep.mubr.bf16.mxu0 0
    %800 = vmatmul.mubr.bf16.gmra.mxu0 %v765
    %v801 = vpop.f32.mrf.mxu0
    %v802 = vadd.f32 0.0, %v801
    %v803 = vpop.f32.mrf.mxu0
    %v804 = vpop.f32.mrf.mxu0
    %v805 = vpop.f32.mrf.mxu0
    %806 = vdwg.mxu0
    %v807 = vadd.f32 %v762, %v802
    %v808 = vtanh.pop %v807
    %v810 = vsel %vm140, %v808, 0
    %812 = vmatprep.subr.mxu0 0.0
    %813 = vmatpush1.msra.mxu0 0.0
    %814 = vmatprep.subr.mxu0 0.0
    %815 = vmatpush1.msra.mxu0 0.0
    %816 = vmatprep.subr.mxu0 0.0
    %817 = vmatpush1.msra.mxu0 0.0
    %818 = vmatprep.subr.mxu0 0.0
    %819 = vmatpush1.msra.mxu0 0.0
    %820 = vmatprep.subr.mxu0 0.0
    %821 = vmatpush1.msra.mxu0 0.0
    %822 = vmatprep.subr.mxu0 0.0
    %823 = vmatpush1.msra.mxu0 0.0
    %824 = vmatprep.subr.mxu0 0.0
    %825 = vmatpush1.msra.mxu0 0.0
    %826 = vmatprep.subr.mxu0 0.0
    %827 = vmatpush1.msra.mxu0 0.0
    %828 = vmatprep.subr.mxu0 0.0
    %829 = vmatpush1.msra.mxu0 0.0
    %830 = vmatprep.subr.mxu0 0.0
    %831 = vmatpush1.msra.mxu0 0.0
    %832 = vmatprep.subr.mxu0 0.0
    %833 = vmatpush1.msra.mxu0 0.0
    %834 = vmatprep.subr.mxu0 0.0
    %835 = vmatpush1.msra.mxu0 0.0
    %836 = vmatprep.subr.mxu0 0.0
    %837 = vmatpush1.msra.mxu0 %v158
    %838 = vmatprep.subr.mxu0 0.0
    %839 = vmatpush1.msra.mxu0 %v157
    %840 = vmatprep.subr.mxu0 0.0
    %841 = vmatpush1.msra.mxu0 %v156
    %842 = vmatprep.subr.mxu0 0.0
    %843 = vmatpush1.msra.mxu0 %v155
    %844 = vmatprep.subr.mxu0 0.0
    %845 = vmatpush2.msra.mxu0 0.0
    %846 = vmatprep.subr.mxu0 0.0
    %847 = vmatpush2.msra.mxu0 0.0
    %848 = vmatprep.subr.mxu0 0.0
    %849 = vmatpush2.msra.mxu0 0.0
    %850 = vmatprep.subr.mxu0 0.0
    %851 = vmatpush2.msra.mxu0 0.0
    %852 = vmatprep.subr.mxu0 0.0
    %853 = vmatpush2.msra.mxu0 0.0
    %854 = vmatprep.subr.mxu0 0.0
    %855 = vmatpush2.msra.mxu0 0.0
    %856 = vmatprep.subr.mxu0 0.0
    %857 = vmatpush2.msra.mxu0 0.0
    %858 = vmatprep.subr.mxu0 0.0
    %859 = vmatpush2.msra.mxu0 0.0
    %860 = vmatprep.subr.mxu0 0.0
    %861 = vmatpush2.msra.mxu0 0.0
    %862 = vmatprep.subr.mxu0 0.0
    %863 = vmatpush2.msra.mxu0 0.0
    %864 = vmatprep.subr.mxu0 0.0
    %865 = vmatpush2.msra.mxu0 0.0
    %866 = vmatprep.subr.mxu0 0.0
    %867 = vmatpush2.msra.mxu0 0.0
    %868 = vmatprep.subr.mxu0 0.0
    %869 = vmatpush2.msra.mxu0 0.0
    %870 = vmatprep.subr.mxu0 0.0
    %871 = vmatpush2.msra.mxu0 0.0
    %872 = vmatprep.subr.mxu0 0.0
    %873 = vmatpush2.msra.mxu0 0.0
    %874 = vmatprep.subr.mxu0 0.0
    %875 = vmatpush2.msra.mxu0 0.0
    %876 = vmatprep.mubr.f32.mxu0 0.0
    %877 = vmatmul.mubr.f32.gmra.mxu0 %v810
    %v878 = vpop.f32.mrf.mxu0
    %v879 = vadd.f32 %v215, %v878
    %v880 = vpop.f32.mrf.mxu0
    %881 = vdwg.mxu0
    %v882 = vmax.f32 %v879, 0.0
    %v884 = vsel %vm297, %v882, 0
    %886 = vmatprep.subr.mxu0 0.0
    %887 = vmatpush1.msra.mxu0 0.0
    %888 = vmatprep.subr.mxu0 0.0
    %889 = vmatpush1.msra.mxu0 0.0
    %890 = vmatprep.subr.mxu0 0.0
    %891 = vmatpush1.msra.mxu0 0.0
    %892 = vmatprep.subr.mxu0 0.0
    %893 = vmatpush1.msra.mxu0 0.0
    %894 = vmatprep.subr.mxu0 0.0
    %895 = vmatpush1.msra.mxu0 0.0
    %896 = vmatprep.subr.mxu0 0.0
    %897 = vmatpush1.msra.mxu0 0.0
    %898 = vmatprep.subr.mxu0 0.0
    %899 = vmatpush1.msra.mxu0 0.0
    %900 = vmatprep.subr.mxu0 0.0
    %901 = vmatpush1.msra.mxu0 0.0
    %902 = vmatprep.subr.mxu0 0.0
    %903 = vmatpush1.msra.mxu0 0.0
    %904 = vmatprep.subr.mxu0 0.0
    %905 = vmatpush1.msra.mxu0 0.0
    %906 = vmatprep.subr.mxu0 0.0
    %907 = vmatpush1.msra.mxu0 0.0
    %908 = vmatprep.subr.mxu0 0.0
    %909 = vmatpush1.msra.mxu0 0.0
    %910 = vmatprep.subr.mxu0 0.0
    %911 = vmatpush1.msra.mxu0 0.0
    %912 = vmatprep.subr.mxu0 0.0
    %913 = vmatpush1.msra.mxu0 0.0
    %914 = vmatprep.subr.mxu0 0.0
    %915 = vmatpush1.msra.mxu0 %v161
    %916 = vmatprep.subr.mxu0 0.0
    %917 = vmatpush1.msra.mxu0 %v160
    %918 = vmatprep.subr.mxu0 0.0
    %919 = vmatpush2.msra.mxu0 0.0
    %920 = vmatprep.subr.mxu0 0.0
    %921 = vmatpush2.msra.mxu0 0.0
    %922 = vmatprep.subr.mxu0 0.0
    %923 = vmatpush2.msra.mxu0 0.0
    %924 = vmatprep.subr.mxu0 0.0
    %925 = vmatpush2.msra.mxu0 0.0
    %926 = vmatprep.subr.mxu0 0.0
    %927 = vmatpush2.msra.mxu0 0.0
    %928 = vmatprep.subr.mxu0 0.0
    %929 = vmatpush2.msra.mxu0 0.0
    %930 = vmatprep.subr.mxu0 0.0
    %931 = vmatpush2.msra.mxu0 0.0
    %932 = vmatprep.subr.mxu0 0.0
    %933 = vmatpush2.msra.mxu0 0.0
    %934 = vmatprep.subr.mxu0 0.0
    %935 = vmatpush2.msra.mxu0 0.0
    %936 = vmatprep.subr.mxu0 0.0
    %937 = vmatpush2.msra.mxu0 0.0
    %938 = vmatprep.subr.mxu0 0.0
    %939 = vmatpush2.msra.mxu0 0.0
    %940 = vmatprep.subr.mxu0 0.0
    %941 = vmatpush2.msra.mxu0 0.0
    %942 = vmatprep.subr.mxu0 0.0
    %943 = vmatpush2.msra.mxu0 0.0
    %944 = vmatprep.subr.mxu0 0.0
    %945 = vmatpush2.msra.mxu0 0.0
    %946 = vmatprep.subr.mxu0 0.0
    %947 = vmatpush2.msra.mxu0 0.0
    %948 = vmatprep.subr.mxu0 0.0
    %949 = vmatpush2.msra.mxu0 0.0
    %950 = vmatprep.mubr.f32.mxu0 0.0
    %951 = vmatmul.mubr.f32.gmra.mxu0 %v884
    %v952 = vpop.f32.mrf.mxu0
    %v953 = vadd.f32 %v295, %v952
    %v954 = vpop.f32.mrf.mxu0
    %955 = vdwg.mxu0
    %956 = vst [vmem:[#allocation3 + $0x18] sm:$0xff] %v953
    %v957 = vld [vmem:[#allocation2 + $0x20] sm:$0xff]
    %v958 = vpack.c.bf16 %v808, %v808
    %v960 = vsel %vm140, %v958, 0
    %962 = vmatprep.subr.bf16.mxu0 0
    %963 = vmatpush1.bf16.msra.mxu0 0
    %964 = vmatprep.subr.bf16.mxu0 0
    %965 = vmatpush1.bf16.msra.mxu0 0
    %966 = vmatprep.subr.bf16.mxu0 0
    %967 = vmatpush1.bf16.msra.mxu0 0
    %968 = vmatprep.subr.bf16.mxu0 0
    %969 = vmatpush1.bf16.msra.mxu0 0
    %970 = vmatprep.subr.bf16.mxu0 0
    %971 = vmatpush1.bf16.msra.mxu0 0
    %972 = vmatprep.subr.bf16.mxu0 0
    %973 = vmatpush1.bf16.msra.mxu0 0
    %974 = vmatprep.subr.bf16.mxu0 0
    %975 = vmatpush1.bf16.msra.mxu0 %v154
    %976 = vmatprep.subr.bf16.mxu0 0
    %977 = vmatpush1.bf16.msra.mxu0 %v153
    %978 = vmatprep.subr.bf16.mxu0 0
    %979 = vmatpush2.bf16.msra.mxu0 0
    %980 = vmatprep.subr.bf16.mxu0 0
    %981 = vmatpush2.bf16.msra.mxu0 0
    %982 = vmatprep.subr.bf16.mxu0 0
    %983 = vmatpush2.bf16.msra.mxu0 0
    %984 = vmatprep.subr.bf16.mxu0 0
    %985 = vmatpush2.bf16.msra.mxu0 0
    %986 = vmatprep.subr.bf16.mxu0 0
    %987 = vmatpush2.bf16.msra.mxu0 0
    %988 = vmatprep.subr.bf16.mxu0 0
    %989 = vmatpush2.bf16.msra.mxu0 0
    %990 = vmatprep.subr.bf16.mxu0 0
    %991 = vmatpush2.bf16.msra.mxu0 0
    %992 = vmatprep.subr.bf16.mxu0 0
    %993 = vmatpush2.bf16.msra.mxu0 0
    %994 = vmatprep.mubr.bf16.mxu0 0
    %995 = vmatmul.mubr.bf16.gmra.mxu0 %v960
    %v996 = vpop.f32.mrf.mxu0
    %v997 = vadd.f32 0.0, %v996
    %v998 = vpop.f32.mrf.mxu0
    %v999 = vpop.f32.mrf.mxu0
    %v1000 = vpop.f32.mrf.mxu0
    %1001 = vdwg.mxu0
    %v1002 = vadd.f32 %v957, %v997
    %v1003 = vtanh.pop %v1002
    %v1005 = vsel %vm140, %v1003, 0
    %1007 = vmatprep.subr.mxu0 0.0
    %1008 = vmatpush1.msra.mxu0 0.0
    %1009 = vmatprep.subr.mxu0 0.0
    %1010 = vmatpush1.msra.mxu0 0.0
    %1011 = vmatprep.subr.mxu0 0.0
    %1012 = vmatpush1.msra.mxu0 0.0
    %1013 = vmatprep.subr.mxu0 0.0
    %1014 = vmatpush1.msra.mxu0 0.0
    %1015 = vmatprep.subr.mxu0 0.0
    %1016 = vmatpush1.msra.mxu0 0.0
    %1017 = vmatprep.subr.mxu0 0.0
    %1018 = vmatpush1.msra.mxu0 0.0
    %1019 = vmatprep.subr.mxu0 0.0
    %1020 = vmatpush1.msra.mxu0 0.0
    %1021 = vmatprep.subr.mxu0 0.0
    %1022 = vmatpush1.msra.mxu0 0.0
    %1023 = vmatprep.subr.mxu0 0.0
    %1024 = vmatpush1.msra.mxu0 0.0
    %1025 = vmatprep.subr.mxu0 0.0
    %1026 = vmatpush1.msra.mxu0 0.0
    %1027 = vmatprep.subr.mxu0 0.0
    %1028 = vmatpush1.msra.mxu0 0.0
    %1029 = vmatprep.subr.mxu0 0.0
    %1030 = vmatpush1.msra.mxu0 0.0
    %1031 = vmatprep.subr.mxu0 0.0
    %1032 = vmatpush1.msra.mxu0 %v158
    %1033 = vmatprep.subr.mxu0 0.0
    %1034 = vmatpush1.msra.mxu0 %v157
    %1035 = vmatprep.subr.mxu0 0.0
    %1036 = vmatpush1.msra.mxu0 %v156
    %1037 = vmatprep.subr.mxu0 0.0
    %1038 = vmatpush1.msra.mxu0 %v155
    %1039 = vmatprep.subr.mxu0 0.0
    %1040 = vmatpush2.msra.mxu0 0.0
    %1041 = vmatprep.subr.mxu0 0.0
    %1042 = vmatpush2.msra.mxu0 0.0
    %1043 = vmatprep.subr.mxu0 0.0
    %1044 = vmatpush2.msra.mxu0 0.0
    %1045 = vmatprep.subr.mxu0 0.0
    %1046 = vmatpush2.msra.mxu0 0.0
    %1047 = vmatprep.subr.mxu0 0.0
    %1048 = vmatpush2.msra.mxu0 0.0
    %1049 = vmatprep.subr.mxu0 0.0
    %1050 = vmatpush2.msra.mxu0 0.0
    %1051 = vmatprep.subr.mxu0 0.0
    %1052 = vmatpush2.msra.mxu0 0.0
    %1053 = vmatprep.subr.mxu0 0.0
    %1054 = vmatpush2.msra.mxu0 0.0
    %1055 = vmatprep.subr.mxu0 0.0
    %1056 = vmatpush2.msra.mxu0 0.0
    %1057 = vmatprep.subr.mxu0 0.0
    %1058 = vmatpush2.msra.mxu0 0.0
    %1059 = vmatprep.subr.mxu0 0.0
    %1060 = vmatpush2.msra.mxu0 0.0
    %1061 = vmatprep.subr.mxu0 0.0
    %1062 = vmatpush2.msra.mxu0 0.0
    %1063 = vmatprep.subr.mxu0 0.0
    %1064 = vmatpush2.msra.mxu0 0.0
    %1065 = vmatprep.subr.mxu0 0.0
    %1066 = vmatpush2.msra.mxu0 0.0
    %1067 = vmatprep.subr.mxu0 0.0
    %1068 = vmatpush2.msra.mxu0 0.0
    %1069 = vmatprep.subr.mxu0 0.0
    %1070 = vmatpush2.msra.mxu0 0.0
    %1071 = vmatprep.mubr.f32.mxu0 0.0
    %1072 = vmatmul.mubr.f32.gmra.mxu0 %v1005
    %v1073 = vpop.f32.mrf.mxu0
    %v1074 = vadd.f32 %v215, %v1073
    %v1075 = vpop.f32.mrf.mxu0
    %1076 = vdwg.mxu0
    %v1077 = vmax.f32 %v1074, 0.0
    %v1079 = vsel %vm297, %v1077, 0
    %1081 = vmatprep.subr.mxu0 0.0
    %1082 = vmatpush1.msra.mxu0 0.0
    %1083 = vmatprep.subr.mxu0 0.0
    %1084 = vmatpush1.msra.mxu0 0.0
    %1085 = vmatprep.subr.mxu0 0.0
    %1086 = vmatpush1.msra.mxu0 0.0
    %1087 = vmatprep.subr.mxu0 0.0
    %1088 = vmatpush1.msra.mxu0 0.0
    %1089 = vmatprep.subr.mxu0 0.0
    %1090 = vmatpush1.msra.mxu0 0.0
    %1091 = vmatprep.subr.mxu0 0.0
    %1092 = vmatpush1.msra.mxu0 0.0
    %1093 = vmatprep.subr.mxu0 0.0
    %1094 = vmatpush1.msra.mxu0 0.0
    %1095 = vmatprep.subr.mxu0 0.0
    %1096 = vmatpush1.msra.mxu0 0.0
    %1097 = vmatprep.subr.mxu0 0.0
    %1098 = vmatpush1.msra.mxu0 0.0
    %1099 = vmatprep.subr.mxu0 0.0
    %1100 = vmatpush1.msra.mxu0 0.0
    %1101 = vmatprep.subr.mxu0 0.0
    %1102 = vmatpush1.msra.mxu0 0.0
    %1103 = vmatprep.subr.mxu0 0.0
    %1104 = vmatpush1.msra.mxu0 0.0
    %1105 = vmatprep.subr.mxu0 0.0
    %1106 = vmatpush1.msra.mxu0 0.0
    %1107 = vmatprep.subr.mxu0 0.0
    %1108 = vmatpush1.msra.mxu0 0.0
    %1109 = vmatprep.subr.mxu0 0.0
    %1110 = vmatpush1.msra.mxu0 %v161
    %1111 = vmatprep.subr.mxu0 0.0
    %1112 = vmatpush1.msra.mxu0 %v160
    %1113 = vmatprep.subr.mxu0 0.0
    %1114 = vmatpush2.msra.mxu0 0.0
    %1115 = vmatprep.subr.mxu0 0.0
    %1116 = vmatpush2.msra.mxu0 0.0
    %1117 = vmatprep.subr.mxu0 0.0
    %1118 = vmatpush2.msra.mxu0 0.0
    %1119 = vmatprep.subr.mxu0 0.0
    %1120 = vmatpush2.msra.mxu0 0.0
    %1121 = vmatprep.subr.mxu0 0.0
    %1122 = vmatpush2.msra.mxu0 0.0
    %1123 = vmatprep.subr.mxu0 0.0
    %1124 = vmatpush2.msra.mxu0 0.0
    %1125 = vmatprep.subr.mxu0 0.0
    %1126 = vmatpush2.msra.mxu0 0.0
    %1127 = vmatprep.subr.mxu0 0.0
    %1128 = vmatpush2.msra.mxu0 0.0
    %1129 = vmatprep.subr.mxu0 0.0
    %1130 = vmatpush2.msra.mxu0 0.0
    %1131 = vmatprep.subr.mxu0 0.0
    %1132 = vmatpush2.msra.mxu0 0.0
    %1133 = vmatprep.subr.mxu0 0.0
    %1134 = vmatpush2.msra.mxu0 0.0
    %1135 = vmatprep.subr.mxu0 0.0
    %1136 = vmatpush2.msra.mxu0 0.0
    %1137 = vmatprep.subr.mxu0 0.0
    %1138 = vmatpush2.msra.mxu0 0.0
    %1139 = vmatprep.subr.mxu0 0.0
    %1140 = vmatpush2.msra.mxu0 0.0
    %1141 = vmatprep.subr.mxu0 0.0
    %1142 = vmatpush2.msra.mxu0 0.0
    %1143 = vmatprep.subr.mxu0 0.0
    %1144 = vmatpush2.msra.mxu0 0.0
    %1145 = vmatprep.mubr.f32.mxu0 0.0
    %1146 = vmatmul.mubr.f32.gmra.mxu0 %v1079
    %v1147 = vpop.f32.mrf.mxu0
    %v1148 = vadd.f32 %v295, %v1147
    %v1149 = vpop.f32.mrf.mxu0
    %1150 = vdwg.mxu0
    %1151 = vst [vmem:[#allocation3 + $0x20] sm:$0xff] %v1148
    %v1152 = vld [vmem:[#allocation2 + $0x28] sm:$0xff]
    %v1153 = vpack.c.bf16 %v1003, %v1003
    %v1155 = vsel %vm140, %v1153, 0
    %1157 = vmatprep.subr.bf16.mxu0 0
    %1158 = vmatpush1.bf16.msra.mxu0 0
    %1159 = vmatprep.subr.bf16.mxu0 0
    %1160 = vmatpush1.bf16.msra.mxu0 0
    %1161 = vmatprep.subr.bf16.mxu0 0
    %1162 = vmatpush1.bf16.msra.mxu0 0
    %1163 = vmatprep.subr.bf16.mxu0 0
    %1164 = vmatpush1.bf16.msra.mxu0 0
    %1165 = vmatprep.subr.bf16.mxu0 0
    %1166 = vmatpush1.bf16.msra.mxu0 0
    %1167 = vmatprep.subr.bf16.mxu0 0
    %1168 = vmatpush1.bf16.msra.mxu0 0
    %1169 = vmatprep.subr.bf16.mxu0 0
    %1170 = vmatpush1.bf16.msra.mxu0 %v154
    %1171 = vmatprep.subr.bf16.mxu0 0
    %1172 = vmatpush1.bf16.msra.mxu0 %v153
    %1173 = vmatprep.subr.bf16.mxu0 0
    %1174 = vmatpush2.bf16.msra.mxu0 0
    %1175 = vmatprep.subr.bf16.mxu0 0
    %1176 = vmatpush2.bf16.msra.mxu0 0
    %1177 = vmatprep.subr.bf16.mxu0 0
    %1178 = vmatpush2.bf16.msra.mxu0 0
    %1179 = vmatprep.subr.bf16.mxu0 0
    %1180 = vmatpush2.bf16.msra.mxu0 0
    %1181 = vmatprep.subr.bf16.mxu0 0
    %1182 = vmatpush2.bf16.msra.mxu0 0
    %1183 = vmatprep.subr.bf16.mxu0 0
    %1184 = vmatpush2.bf16.msra.mxu0 0
    %1185 = vmatprep.subr.bf16.mxu0 0
    %1186 = vmatpush2.bf16.msra.mxu0 0
    %1187 = vmatprep.subr.bf16.mxu0 0
    %1188 = vmatpush2.bf16.msra.mxu0 0
    %1189 = vmatprep.mubr.bf16.mxu0 0
    %1190 = vmatmul.mubr.bf16.gmra.mxu0 %v1155
    %v1191 = vpop.f32.mrf.mxu0
    %v1192 = vadd.f32 0.0, %v1191
    %v1193 = vpop.f32.mrf.mxu0
    %v1194 = vpop.f32.mrf.mxu0
    %v1195 = vpop.f32.mrf.mxu0
    %1196 = vdwg.mxu0
    %v1197 = vadd.f32 %v1152, %v1192
    %v1198 = vtanh.pop %v1197
    %v1200 = vsel %vm140, %v1198, 0
    %1202 = vmatprep.subr.mxu0 0.0
    %1203 = vmatpush1.msra.mxu0 0.0
    %1204 = vmatprep.subr.mxu0 0.0
    %1205 = vmatpush1.msra.mxu0 0.0
    %1206 = vmatprep.subr.mxu0 0.0
    %1207 = vmatpush1.msra.mxu0 0.0
    %1208 = vmatprep.subr.mxu0 0.0
    %1209 = vmatpush1.msra.mxu0 0.0
    %1210 = vmatprep.subr.mxu0 0.0
    %1211 = vmatpush1.msra.mxu0 0.0
    %1212 = vmatprep.subr.mxu0 0.0
    %1213 = vmatpush1.msra.mxu0 0.0
    %1214 = vmatprep.subr.mxu0 0.0
    %1215 = vmatpush1.msra.mxu0 0.0
    %1216 = vmatprep.subr.mxu0 0.0
    %1217 = vmatpush1.msra.mxu0 0.0
    %1218 = vmatprep.subr.mxu0 0.0
    %1219 = vmatpush1.msra.mxu0 0.0
    %1220 = vmatprep.subr.mxu0 0.0
    %1221 = vmatpush1.msra.mxu0 0.0
    %1222 = vmatprep.subr.mxu0 0.0
    %1223 = vmatpush1.msra.mxu0 0.0
    %1224 = vmatprep.subr.mxu0 0.0
    %1225 = vmatpush1.msra.mxu0 0.0
    %1226 = vmatprep.subr.mxu0 0.0
    %1227 = vmatpush1.msra.mxu0 %v158
    %1228 = vmatprep.subr.mxu0 0.0
    %1229 = vmatpush1.msra.mxu0 %v157
    %1230 = vmatprep.subr.mxu0 0.0
    %1231 = vmatpush1.msra.mxu0 %v156
    %1232 = vmatprep.subr.mxu0 0.0
    %1233 = vmatpush1.msra.mxu0 %v155
    %1234 = vmatprep.subr.mxu0 0.0
    %1235 = vmatpush2.msra.mxu0 0.0
    %1236 = vmatprep.subr.mxu0 0.0
    %1237 = vmatpush2.msra.mxu0 0.0
    %1238 = vmatprep.subr.mxu0 0.0
    %1239 = vmatpush2.msra.mxu0 0.0
    %1240 = vmatprep.subr.mxu0 0.0
    %1241 = vmatpush2.msra.mxu0 0.0
    %1242 = vmatprep.subr.mxu0 0.0
    %1243 = vmatpush2.msra.mxu0 0.0
    %1244 = vmatprep.subr.mxu0 0.0
    %1245 = vmatpush2.msra.mxu0 0.0
    %1246 = vmatprep.subr.mxu0 0.0
    %1247 = vmatpush2.msra.mxu0 0.0
    %1248 = vmatprep.subr.mxu0 0.0
    %1249 = vmatpush2.msra.mxu0 0.0
    %1250 = vmatprep.subr.mxu0 0.0
    %1251 = vmatpush2.msra.mxu0 0.0
    %1252 = vmatprep.subr.mxu0 0.0
    %1253 = vmatpush2.msra.mxu0 0.0
    %1254 = vmatprep.subr.mxu0 0.0
    %1255 = vmatpush2.msra.mxu0 0.0
    %1256 = vmatprep.subr.mxu0 0.0
    %1257 = vmatpush2.msra.mxu0 0.0
    %1258 = vmatprep.subr.mxu0 0.0
    %1259 = vmatpush2.msra.mxu0 0.0
    %1260 = vmatprep.subr.mxu0 0.0
    %1261 = vmatpush2.msra.mxu0 0.0
    %1262 = vmatprep.subr.mxu0 0.0
    %1263 = vmatpush2.msra.mxu0 0.0
    %1264 = vmatprep.subr.mxu0 0.0
    %1265 = vmatpush2.msra.mxu0 0.0
    %1266 = vmatprep.mubr.f32.mxu0 0.0
    %1267 = vmatmul.mubr.f32.gmra.mxu0 %v1200
    %v1268 = vpop.f32.mrf.mxu0
    %v1269 = vadd.f32 %v215, %v1268
    %v1270 = vpop.f32.mrf.mxu0
    %1271 = vdwg.mxu0
    %v1272 = vmax.f32 %v1269, 0.0
    %v1274 = vsel %vm297, %v1272, 0
    %1276 = vmatprep.subr.mxu0 0.0
    %1277 = vmatpush1.msra.mxu0 0.0
    %1278 = vmatprep.subr.mxu0 0.0
    %1279 = vmatpush1.msra.mxu0 0.0
    %1280 = vmatprep.subr.mxu0 0.0
    %1281 = vmatpush1.msra.mxu0 0.0
    %1282 = vmatprep.subr.mxu0 0.0
    %1283 = vmatpush1.msra.mxu0 0.0
    %1284 = vmatprep.subr.mxu0 0.0
    %1285 = vmatpush1.msra.mxu0 0.0
    %1286 = vmatprep.subr.mxu0 0.0
    %1287 = vmatpush1.msra.mxu0 0.0
    %1288 = vmatprep.subr.mxu0 0.0
    %1289 = vmatpush1.msra.mxu0 0.0
    %1290 = vmatprep.subr.mxu0 0.0
    %1291 = vmatpush1.msra.mxu0 0.0
    %1292 = vmatprep.subr.mxu0 0.0
    %1293 = vmatpush1.msra.mxu0 0.0
    %1294 = vmatprep.subr.mxu0 0.0
    %1295 = vmatpush1.msra.mxu0 0.0
    %1296 = vmatprep.subr.mxu0 0.0
    %1297 = vmatpush1.msra.mxu0 0.0
    %1298 = vmatprep.subr.mxu0 0.0
    %1299 = vmatpush1.msra.mxu0 0.0
    %1300 = vmatprep.subr.mxu0 0.0
    %1301 = vmatpush1.msra.mxu0 0.0
    %1302 = vmatprep.subr.mxu0 0.0
    %1303 = vmatpush1.msra.mxu0 0.0
    %1304 = vmatprep.subr.mxu0 0.0
    %1305 = vmatpush1.msra.mxu0 %v161
    %1306 = vmatprep.subr.mxu0 0.0
    %1307 = vmatpush1.msra.mxu0 %v160
    %1308 = vmatprep.subr.mxu0 0.0
    %1309 = vmatpush2.msra.mxu0 0.0
    %1310 = vmatprep.subr.mxu0 0.0
    %1311 = vmatpush2.msra.mxu0 0.0
    %1312 = vmatprep.subr.mxu0 0.0
    %1313 = vmatpush2.msra.mxu0 0.0
    %1314 = vmatprep.subr.mxu0 0.0
    %1315 = vmatpush2.msra.mxu0 0.0
    %1316 = vmatprep.subr.mxu0 0.0
    %1317 = vmatpush2.msra.mxu0 0.0
    %1318 = vmatprep.subr.mxu0 0.0
    %1319 = vmatpush2.msra.mxu0 0.0
    %1320 = vmatprep.subr.mxu0 0.0
    %1321 = vmatpush2.msra.mxu0 0.0
    %1322 = vmatprep.subr.mxu0 0.0
    %1323 = vmatpush2.msra.mxu0 0.0
    %1324 = vmatprep.subr.mxu0 0.0
    %1325 = vmatpush2.msra.mxu0 0.0
    %1326 = vmatprep.subr.mxu0 0.0
    %1327 = vmatpush2.msra.mxu0 0.0
    %1328 = vmatprep.subr.mxu0 0.0
    %1329 = vmatpush2.msra.mxu0 0.0
    %1330 = vmatprep.subr.mxu0 0.0
    %1331 = vmatpush2.msra.mxu0 0.0
    %1332 = vmatprep.subr.mxu0 0.0
    %1333 = vmatpush2.msra.mxu0 0.0
    %1334 = vmatprep.subr.mxu0 0.0
    %1335 = vmatpush2.msra.mxu0 0.0
    %1336 = vmatprep.subr.mxu0 0.0
    %1337 = vmatpush2.msra.mxu0 0.0
    %1338 = vmatprep.subr.mxu0 0.0
    %1339 = vmatpush2.msra.mxu0 0.0
    %1340 = vmatprep.mubr.f32.mxu0 0.0
    %1341 = vmatmul.mubr.f32.gmra.mxu0 %v1274
    %v1342 = vpop.f32.mrf.mxu0
    %v1343 = vadd.f32 %v295, %v1342
    %v1344 = vpop.f32.mrf.mxu0
    %1345 = vdwg.mxu0
    %1346 = vst [vmem:[#allocation3 + $0x28] sm:$0xff] %v1343
    %v1347 = vld [vmem:[#allocation2 + $0x30] sm:$0xff]
    %v1348 = vpack.c.bf16 %v1198, %v1198
    %v1350 = vsel %vm140, %v1348, 0
    %1352 = vmatprep.subr.bf16.mxu0 0
    %1353 = vmatpush1.bf16.msra.mxu0 0
    %1354 = vmatprep.subr.bf16.mxu0 0
    %1355 = vmatpush1.bf16.msra.mxu0 0
    %1356 = vmatprep.subr.bf16.mxu0 0
    %1357 = vmatpush1.bf16.msra.mxu0 0
    %1358 = vmatprep.subr.bf16.mxu0 0
    %1359 = vmatpush1.bf16.msra.mxu0 0
    %1360 = vmatprep.subr.bf16.mxu0 0
    %1361 = vmatpush1.bf16.msra.mxu0 0
    %1362 = vmatprep.subr.bf16.mxu0 0
    %1363 = vmatpush1.bf16.msra.mxu0 0
    %1364 = vmatprep.subr.bf16.mxu0 0
    %1365 = vmatpush1.bf16.msra.mxu0 %v154
    %1366 = vmatprep.subr.bf16.mxu0 0
    %1367 = vmatpush1.bf16.msra.mxu0 %v153
    %1368 = vmatprep.subr.bf16.mxu0 0
    %1369 = vmatpush2.bf16.msra.mxu0 0
    %1370 = vmatprep.subr.bf16.mxu0 0
    %1371 = vmatpush2.bf16.msra.mxu0 0
    %1372 = vmatprep.subr.bf16.mxu0 0
    %1373 = vmatpush2.bf16.msra.mxu0 0
    %1374 = vmatprep.subr.bf16.mxu0 0
    %1375 = vmatpush2.bf16.msra.mxu0 0
    %1376 = vmatprep.subr.bf16.mxu0 0
    %1377 = vmatpush2.bf16.msra.mxu0 0
    %1378 = vmatprep.subr.bf16.mxu0 0
    %1379 = vmatpush2.bf16.msra.mxu0 0
    %1380 = vmatprep.subr.bf16.mxu0 0
    %1381 = vmatpush2.bf16.msra.mxu0 0
    %1382 = vmatprep.subr.bf16.mxu0 0
    %1383 = vmatpush2.bf16.msra.mxu0 0
    %1384 = vmatprep.mubr.bf16.mxu0 0
    %1385 = vmatmul.mubr.bf16.gmra.mxu0 %v1350
    %v1386 = vpop.f32.mrf.mxu0
    %v1387 = vadd.f32 0.0, %v1386
    %v1388 = vpop.f32.mrf.mxu0
    %v1389 = vpop.f32.mrf.mxu0
    %v1390 = vpop.f32.mrf.mxu0
    %1391 = vdwg.mxu0
    %v1392 = vadd.f32 %v1347, %v1387
    %v1393 = vtanh.pop %v1392
    %v1395 = vsel %vm140, %v1393, 0
    %1397 = vmatprep.subr.mxu0 0.0
    %1398 = vmatpush1.msra.mxu0 0.0
    %1399 = vmatprep.subr.mxu0 0.0
    %1400 = vmatpush1.msra.mxu0 0.0
    %1401 = vmatprep.subr.mxu0 0.0
    %1402 = vmatpush1.msra.mxu0 0.0
    %1403 = vmatprep.subr.mxu0 0.0
    %1404 = vmatpush1.msra.mxu0 0.0
    %1405 = vmatprep.subr.mxu0 0.0
    %1406 = vmatpush1.msra.mxu0 0.0
    %1407 = vmatprep.subr.mxu0 0.0
    %1408 = vmatpush1.msra.mxu0 0.0
    %1409 = vmatprep.subr.mxu0 0.0
    %1410 = vmatpush1.msra.mxu0 0.0
    %1411 = vmatprep.subr.mxu0 0.0
    %1412 = vmatpush1.msra.mxu0 0.0
    %1413 = vmatprep.subr.mxu0 0.0
    %1414 = vmatpush1.msra.mxu0 0.0
    %1415 = vmatprep.subr.mxu0 0.0
    %1416 = vmatpush1.msra.mxu0 0.0
    %1417 = vmatprep.subr.mxu0 0.0
    %1418 = vmatpush1.msra.mxu0 0.0
    %1419 = vmatprep.subr.mxu0 0.0
    %1420 = vmatpush1.msra.mxu0 0.0
    %1421 = vmatprep.subr.mxu0 0.0
    %1422 = vmatpush1.msra.mxu0 %v158
    %1423 = vmatprep.subr.mxu0 0.0
    %1424 = vmatpush1.msra.mxu0 %v157
    %1425 = vmatprep.subr.mxu0 0.0
    %1426 = vmatpush1.msra.mxu0 %v156
    %1427 = vmatprep.subr.mxu0 0.0
    %1428 = vmatpush1.msra.mxu0 %v155
    %1429 = vmatprep.subr.mxu0 0.0
    %1430 = vmatpush2.msra.mxu0 0.0
    %1431 = vmatprep.subr.mxu0 0.0
    %1432 = vmatpush2.msra.mxu0 0.0
    %1433 = vmatprep.subr.mxu0 0.0
    %1434 = vmatpush2.msra.mxu0 0.0
    %1435 = vmatprep.subr.mxu0 0.0
    %1436 = vmatpush2.msra.mxu0 0.0
    %1437 = vmatprep.subr.mxu0 0.0
    %1438 = vmatpush2.msra.mxu0 0.0
    %1439 = vmatprep.subr.mxu0 0.0
    %1440 = vmatpush2.msra.mxu0 0.0
    %1441 = vmatprep.subr.mxu0 0.0
    %1442 = vmatpush2.msra.mxu0 0.0
    %1443 = vmatprep.subr.mxu0 0.0
    %1444 = vmatpush2.msra.mxu0 0.0
    %1445 = vmatprep.subr.mxu0 0.0
    %1446 = vmatpush2.msra.mxu0 0.0
    %1447 = vmatprep.subr.mxu0 0.0
    %1448 = vmatpush2.msra.mxu0 0.0
    %1449 = vmatprep.subr.mxu0 0.0
    %1450 = vmatpush2.msra.mxu0 0.0
    %1451 = vmatprep.subr.mxu0 0.0
    %1452 = vmatpush2.msra.mxu0 0.0
    %1453 = vmatprep.subr.mxu0 0.0
    %1454 = vmatpush2.msra.mxu0 0.0
    %1455 = vmatprep.subr.mxu0 0.0
    %1456 = vmatpush2.msra.mxu0 0.0
    %1457 = vmatprep.subr.mxu0 0.0
    %1458 = vmatpush2.msra.mxu0 0.0
    %1459 = vmatprep.subr.mxu0 0.0
    %1460 = vmatpush2.msra.mxu0 0.0
    %1461 = vmatprep.mubr.f32.mxu0 0.0
    %1462 = vmatmul.mubr.f32.gmra.mxu0 %v1395
    %v1463 = vpop.f32.mrf.mxu0
    %v1464 = vadd.f32 %v215, %v1463
    %v1465 = vpop.f32.mrf.mxu0
    %1466 = vdwg.mxu0
    %v1467 = vmax.f32 %v1464, 0.0
    %v1469 = vsel %vm297, %v1467, 0
    %1471 = vmatprep.subr.mxu0 0.0
    %1472 = vmatpush1.msra.mxu0 0.0
    %1473 = vmatprep.subr.mxu0 0.0
    %1474 = vmatpush1.msra.mxu0 0.0
    %1475 = vmatprep.subr.mxu0 0.0
    %1476 = vmatpush1.msra.mxu0 0.0
    %1477 = vmatprep.subr.mxu0 0.0
    %1478 = vmatpush1.msra.mxu0 0.0
    %1479 = vmatprep.subr.mxu0 0.0
    %1480 = vmatpush1.msra.mxu0 0.0
    %1481 = vmatprep.subr.mxu0 0.0
    %1482 = vmatpush1.msra.mxu0 0.0
    %1483 = vmatprep.subr.mxu0 0.0
    %1484 = vmatpush1.msra.mxu0 0.0
    %1485 = vmatprep.subr.mxu0 0.0
    %1486 = vmatpush1.msra.mxu0 0.0
    %1487 = vmatprep.subr.mxu0 0.0
    %1488 = vmatpush1.msra.mxu0 0.0
    %1489 = vmatprep.subr.mxu0 0.0
    %1490 = vmatpush1.msra.mxu0 0.0
    %1491 = vmatprep.subr.mxu0 0.0
    %1492 = vmatpush1.msra.mxu0 0.0
    %1493 = vmatprep.subr.mxu0 0.0
    %1494 = vmatpush1.msra.mxu0 0.0
    %1495 = vmatprep.subr.mxu0 0.0
    %1496 = vmatpush1.msra.mxu0 0.0
    %1497 = vmatprep.subr.mxu0 0.0
    %1498 = vmatpush1.msra.mxu0 0.0
    %1499 = vmatprep.subr.mxu0 0.0
    %1500 = vmatpush1.msra.mxu0 %v161
    %1501 = vmatprep.subr.mxu0 0.0
    %1502 = vmatpush1.msra.mxu0 %v160
    %1503 = vmatprep.subr.mxu0 0.0
    %1504 = vmatpush2.msra.mxu0 0.0
    %1505 = vmatprep.subr.mxu0 0.0
    %1506 = vmatpush2.msra.mxu0 0.0
    %1507 = vmatprep.subr.mxu0 0.0
    %1508 = vmatpush2.msra.mxu0 0.0
    %1509 = vmatprep.subr.mxu0 0.0
    %1510 = vmatpush2.msra.mxu0 0.0
    %1511 = vmatprep.subr.mxu0 0.0
    %1512 = vmatpush2.msra.mxu0 0.0
    %1513 = vmatprep.subr.mxu0 0.0
    %1514 = vmatpush2.msra.mxu0 0.0
    %1515 = vmatprep.subr.mxu0 0.0
    %1516 = vmatpush2.msra.mxu0 0.0
    %1517 = vmatprep.subr.mxu0 0.0
    %1518 = vmatpush2.msra.mxu0 0.0
    %1519 = vmatprep.subr.mxu0 0.0
    %1520 = vmatpush2.msra.mxu0 0.0
    %1521 = vmatprep.subr.mxu0 0.0
    %1522 = vmatpush2.msra.mxu0 0.0
    %1523 = vmatprep.subr.mxu0 0.0
    %1524 = vmatpush2.msra.mxu0 0.0
    %1525 = vmatprep.subr.mxu0 0.0
    %1526 = vmatpush2.msra.mxu0 0.0
    %1527 = vmatprep.subr.mxu0 0.0
    %1528 = vmatpush2.msra.mxu0 0.0
    %1529 = vmatprep.subr.mxu0 0.0
    %1530 = vmatpush2.msra.mxu0 0.0
    %1531 = vmatprep.subr.mxu0 0.0
    %1532 = vmatpush2.msra.mxu0 0.0
    %1533 = vmatprep.subr.mxu0 0.0
    %1534 = vmatpush2.msra.mxu0 0.0
    %1535 = vmatprep.mubr.f32.mxu0 0.0
    %1536 = vmatmul.mubr.f32.gmra.mxu0 %v1469
    %v1537 = vpop.f32.mrf.mxu0
    %v1538 = vadd.f32 %v295, %v1537
    %v1539 = vpop.f32.mrf.mxu0
    %1540 = vdwg.mxu0
    %1541 = vst [vmem:[#allocation3 + $0x30] sm:$0xff] %v1538
    %v1542 = vld [vmem:[#allocation2 + $0x38] sm:$0xff]
    %v1543 = vpack.c.bf16 %v1393, %v1393
    %v1545 = vsel %vm140, %v1543, 0
    %1547 = vmatprep.subr.bf16.mxu0 0
    %1548 = vmatpush1.bf16.msra.mxu0 0
    %1549 = vmatprep.subr.bf16.mxu0 0
    %1550 = vmatpush1.bf16.msra.mxu0 0
    %1551 = vmatprep.subr.bf16.mxu0 0
    %1552 = vmatpush1.bf16.msra.mxu0 0
    %1553 = vmatprep.subr.bf16.mxu0 0
    %1554 = vmatpush1.bf16.msra.mxu0 0
    %1555 = vmatprep.subr.bf16.mxu0 0
    %1556 = vmatpush1.bf16.msra.mxu0 0
    %1557 = vmatprep.subr.bf16.mxu0 0
    %1558 = vmatpush1.bf16.msra.mxu0 0
    %1559 = vmatprep.subr.bf16.mxu0 0
    %1560 = vmatpush1.bf16.msra.mxu0 %v154
    %1561 = vmatprep.subr.bf16.mxu0 0
    %1562 = vmatpush1.bf16.msra.mxu0 %v153
    %1563 = vmatprep.subr.bf16.mxu0 0
    %1564 = vmatpush2.bf16.msra.mxu0 0
    %1565 = vmatprep.subr.bf16.mxu0 0
    %1566 = vmatpush2.bf16.msra.mxu0 0
    %1567 = vmatprep.subr.bf16.mxu0 0
    %1568 = vmatpush2.bf16.msra.mxu0 0
    %1569 = vmatprep.subr.bf16.mxu0 0
    %1570 = vmatpush2.bf16.msra.mxu0 0
    %1571 = vmatprep.subr.bf16.mxu0 0
    %1572 = vmatpush2.bf16.msra.mxu0 0
    %1573 = vmatprep.subr.bf16.mxu0 0
    %1574 = vmatpush2.bf16.msra.mxu0 0
    %1575 = vmatprep.subr.bf16.mxu0 0
    %1576 = vmatpush2.bf16.msra.mxu0 0
    %1577 = vmatprep.subr.bf16.mxu0 0
    %1578 = vmatpush2.bf16.msra.mxu0 0
    %1579 = vmatprep.mubr.bf16.mxu0 0
    %1580 = vmatmul.mubr.bf16.gmra.mxu0 %v1545
    %v1581 = vpop.f32.mrf.mxu0
    %v1582 = vadd.f32 0.0, %v1581
    %v1583 = vpop.f32.mrf.mxu0
    %v1584 = vpop.f32.mrf.mxu0
    %v1585 = vpop.f32.mrf.mxu0
    %1586 = vdwg.mxu0
    %v1587 = vadd.f32 %v1542, %v1582
    %v1588 = vtanh.pop %v1587
    %v1590 = vsel %vm140, %v1588, 0
    %1592 = vmatprep.subr.mxu0 0.0
    %1593 = vmatpush1.msra.mxu0 0.0
    %1594 = vmatprep.subr.mxu0 0.0
    %1595 = vmatpush1.msra.mxu0 0.0
    %1596 = vmatprep.subr.mxu0 0.0
    %1597 = vmatpush1.msra.mxu0 0.0
    %1598 = vmatprep.subr.mxu0 0.0
    %1599 = vmatpush1.msra.mxu0 0.0
    %1600 = vmatprep.subr.mxu0 0.0
    %1601 = vmatpush1.msra.mxu0 0.0
    %1602 = vmatprep.subr.mxu0 0.0
    %1603 = vmatpush1.msra.mxu0 0.0
    %1604 = vmatprep.subr.mxu0 0.0
    %1605 = vmatpush1.msra.mxu0 0.0
    %1606 = vmatprep.subr.mxu0 0.0
    %1607 = vmatpush1.msra.mxu0 0.0
    %1608 = vmatprep.subr.mxu0 0.0
    %1609 = vmatpush1.msra.mxu0 0.0
    %1610 = vmatprep.subr.mxu0 0.0
    %1611 = vmatpush1.msra.mxu0 0.0
    %1612 = vmatprep.subr.mxu0 0.0
    %1613 = vmatpush1.msra.mxu0 0.0
    %1614 = vmatprep.subr.mxu0 0.0
    %1615 = vmatpush1.msra.mxu0 0.0
    %1616 = vmatprep.subr.mxu0 0.0
    %1617 = vmatpush1.msra.mxu0 %v158
    %1618 = vmatprep.subr.mxu0 0.0
    %1619 = vmatpush1.msra.mxu0 %v157
    %1620 = vmatprep.subr.mxu0 0.0
    %1621 = vmatpush1.msra.mxu0 %v156
    %1622 = vmatprep.subr.mxu0 0.0
    %1623 = vmatpush1.msra.mxu0 %v155
    %1624 = vmatprep.subr.mxu0 0.0
    %1625 = vmatpush2.msra.mxu0 0.0
    %1626 = vmatprep.subr.mxu0 0.0
    %1627 = vmatpush2.msra.mxu0 0.0
    %1628 = vmatprep.subr.mxu0 0.0
    %1629 = vmatpush2.msra.mxu0 0.0
    %1630 = vmatprep.subr.mxu0 0.0
    %1631 = vmatpush2.msra.mxu0 0.0
    %1632 = vmatprep.subr.mxu0 0.0
    %1633 = vmatpush2.msra.mxu0 0.0
    %1634 = vmatprep.subr.mxu0 0.0
    %1635 = vmatpush2.msra.mxu0 0.0
    %1636 = vmatprep.subr.mxu0 0.0
    %1637 = vmatpush2.msra.mxu0 0.0
    %1638 = vmatprep.subr.mxu0 0.0
    %1639 = vmatpush2.msra.mxu0 0.0
    %1640 = vmatprep.subr.mxu0 0.0
    %1641 = vmatpush2.msra.mxu0 0.0
    %1642 = vmatprep.subr.mxu0 0.0
    %1643 = vmatpush2.msra.mxu0 0.0
    %1644 = vmatprep.subr.mxu0 0.0
    %1645 = vmatpush2.msra.mxu0 0.0
    %1646 = vmatprep.subr.mxu0 0.0
    %1647 = vmatpush2.msra.mxu0 0.0
    %1648 = vmatprep.subr.mxu0 0.0
    %1649 = vmatpush2.msra.mxu0 0.0
    %1650 = vmatprep.subr.mxu0 0.0
    %1651 = vmatpush2.msra.mxu0 0.0
    %1652 = vmatprep.subr.mxu0 0.0
    %1653 = vmatpush2.msra.mxu0 0.0
    %1654 = vmatprep.subr.mxu0 0.0
    %1655 = vmatpush2.msra.mxu0 0.0
    %1656 = vmatprep.mubr.f32.mxu0 0.0
    %1657 = vmatmul.mubr.f32.gmra.mxu0 %v1590
    %v1658 = vpop.f32.mrf.mxu0
    %v1659 = vadd.f32 %v215, %v1658
    %v1660 = vpop.f32.mrf.mxu0
    %1661 = vdwg.mxu0
    %v1662 = vmax.f32 %v1659, 0.0
    %v1664 = vsel %vm297, %v1662, 0
    %1666 = vmatprep.subr.mxu0 0.0
    %1667 = vmatpush1.msra.mxu0 0.0
    %1668 = vmatprep.subr.mxu0 0.0
    %1669 = vmatpush1.msra.mxu0 0.0
    %1670 = vmatprep.subr.mxu0 0.0
    %1671 = vmatpush1.msra.mxu0 0.0
    %1672 = vmatprep.subr.mxu0 0.0
    %1673 = vmatpush1.msra.mxu0 0.0
    %1674 = vmatprep.subr.mxu0 0.0
    %1675 = vmatpush1.msra.mxu0 0.0
    %1676 = vmatprep.subr.mxu0 0.0
    %1677 = vmatpush1.msra.mxu0 0.0
    %1678 = vmatprep.subr.mxu0 0.0
    %1679 = vmatpush1.msra.mxu0 0.0
    %1680 = vmatprep.subr.mxu0 0.0
    %1681 = vmatpush1.msra.mxu0 0.0
    %1682 = vmatprep.subr.mxu0 0.0
    %1683 = vmatpush1.msra.mxu0 0.0
    %1684 = vmatprep.subr.mxu0 0.0
    %1685 = vmatpush1.msra.mxu0 0.0
    %1686 = vmatprep.subr.mxu0 0.0
    %1687 = vmatpush1.msra.mxu0 0.0
    %1688 = vmatprep.subr.mxu0 0.0
    %1689 = vmatpush1.msra.mxu0 0.0
    %1690 = vmatprep.subr.mxu0 0.0
    %1691 = vmatpush1.msra.mxu0 0.0
    %1692 = vmatprep.subr.mxu0 0.0
    %1693 = vmatpush1.msra.mxu0 0.0
    %1694 = vmatprep.subr.mxu0 0.0
    %1695 = vmatpush1.msra.mxu0 %v161
    %1696 = vmatprep.subr.mxu0 0.0
    %1697 = vmatpush1.msra.mxu0 %v160
    %1698 = vmatprep.subr.mxu0 0.0
    %1699 = vmatpush2.msra.mxu0 0.0
    %1700 = vmatprep.subr.mxu0 0.0
    %1701 = vmatpush2.msra.mxu0 0.0
    %1702 = vmatprep.subr.mxu0 0.0
    %1703 = vmatpush2.msra.mxu0 0.0
    %1704 = vmatprep.subr.mxu0 0.0
    %1705 = vmatpush2.msra.mxu0 0.0
    %1706 = vmatprep.subr.mxu0 0.0
    %1707 = vmatpush2.msra.mxu0 0.0
    %1708 = vmatprep.subr.mxu0 0.0
    %1709 = vmatpush2.msra.mxu0 0.0
    %1710 = vmatprep.subr.mxu0 0.0
    %1711 = vmatpush2.msra.mxu0 0.0
    %1712 = vmatprep.subr.mxu0 0.0
    %1713 = vmatpush2.msra.mxu0 0.0
    %1714 = vmatprep.subr.mxu0 0.0
    %1715 = vmatpush2.msra.mxu0 0.0
    %1716 = vmatprep.subr.mxu0 0.0
    %1717 = vmatpush2.msra.mxu0 0.0
    %1718 = vmatprep.subr.mxu0 0.0
    %1719 = vmatpush2.msra.mxu0 0.0
    %1720 = vmatprep.subr.mxu0 0.0
    %1721 = vmatpush2.msra.mxu0 0.0
    %1722 = vmatprep.subr.mxu0 0.0
    %1723 = vmatpush2.msra.mxu0 0.0
    %1724 = vmatprep.subr.mxu0 0.0
    %1725 = vmatpush2.msra.mxu0 0.0
    %1726 = vmatprep.subr.mxu0 0.0
    %1727 = vmatpush2.msra.mxu0 0.0
    %1728 = vmatprep.subr.mxu0 0.0
    %1729 = vmatpush2.msra.mxu0 0.0
    %1730 = vmatprep.mubr.f32.mxu0 0.0
    %1731 = vmatmul.mubr.f32.gmra.mxu0 %v1664
    %v1732 = vpop.f32.mrf.mxu0
    %v1733 = vadd.f32 %v295, %v1732
    %v1734 = vpop.f32.mrf.mxu0
    %1735 = vdwg.mxu0
    %1736 = vst [vmem:[#allocation3 + $0x38] sm:$0xff] %v1733
    %1737 = vst.msk [vmem:[#allocation5] sm:$0xff] %vm140, %v1588
    // Predicated region
    $region38: #{tpu_custom_call.1} parent=1 // pred_check
      _
    $region39: #{tpu_custom_call.1} parent=1 // pred_check_branch
      %1739 = sbr.rel (0) target = $region41
    $region40: #{tpu_custom_call.1} parent=1 // pred_region
      %s1741 = ssub.s32 1024, 1024
      %1742 = vsyncadd [#allocation4], %s1741
      %s1743 = sshll.u32 [#allocation3], 4
      %s1744 = int_to_ptr.vmem [resolvable:$true] %s1743
      %1749 = dma.vmem_to_hbm [thread:$0]  %s1744, 1024, %s9, [#allocation4], 128, 128, 8
    $region41: #{tpu_custom_call.1} parent=1 // pred_fallthru
      _
    // Predicated region
    $region42: #{tpu_custom_call.1} parent=1 // pred_check
      _
    $region43: #{tpu_custom_call.1} parent=1 // pred_check_branch
      %1751 = sbr.rel (0) target = $region45
    $region44: #{tpu_custom_call.1} parent=1 // pred_region
      %s1753 = ssub.s32 128, 128
      %1754 = vsyncadd [#allocation6], %s1753
      %s1756 = sshll.u32 [#allocation5], 4
      %s1757 = int_to_ptr.vmem [resolvable:$true] %s1756
      %1759 = dma.vmem_to_hbm [thread:$0]  %s1757, 128, %s10, [#allocation6]
    $region45: #{tpu_custom_call.1} parent=1 // pred_fallthru
      _
    // Predicated region
    $region46: #{tpu_custom_call.1} parent=1 // pred_check
      _
    $region47: #{tpu_custom_call.1} parent=1 // pred_check_branch
      %1761 = sbr.rel (0) target = $region49
    $region48: #{tpu_custom_call.1} parent=1 // pred_region
      %1762 = dma.done [#allocation4], 1024
    $region49: #{tpu_custom_call.1} parent=1 // pred_fallthru
      _
    // Predicated region
    $region50: #{tpu_custom_call.1} parent=1 // pred_check
      _
    $region51: #{tpu_custom_call.1} parent=1 // pred_check_branch
      %1764 = sbr.rel (0) target = $region53
    $region52: #{tpu_custom_call.1} parent=1 // pred_region
      %1765 = dma.done [#allocation6], 128
    $region53: #{tpu_custom_call.1} parent=1 // pred_fallthru
      _
    %1766 = vsyncpa [#allocation4], 1
    %1767 = vsyncpa [#allocation6], 1

</llo_original>
